<compile_context>
chip_gen: v7x
topology: tpu7x:2x2x1
jax: 0.10.0
libtpu: 0.0.40
codegen_flags: <defaults>
</compile_context>

<pallas_src>
import numpy as np
import jax
import jax.numpy as jnp
from jax.experimental import pallas as pl
from jax.experimental.pallas import tpu as pltpu

N_QUBITS = 2
D = 2 ** N_QUBITS               # 4   Hilbert space dim
OUT_SIZE = 4 ** N_QUBITS        # 16  mixed state -> 4**N real parameters
OUT_SIZE_LOG = 4 * N_QUBITS     # 8   hidden width of fc head
IN_ROW, IN_COL = 16, 16         # crack(in_size=256)
POOL_H, POOL_W = IN_ROW // 2, IN_COL // 2
NPOS = POOL_H * POOL_W          # 64  pooled spatial positions
C_OUT = 10                      # conv out channels
FC_IN = C_OUT * NPOS            # 640
K_POVM = 4                      # tetrahedral POVM operators per qubit
NP_ALL = K_POVM ** N_QUBITS     # 16  joint measurement outcomes
FC1_WIDE = C_OUT * OUT_SIZE_LOG  # 80

P_IDXS = np.array([0, 1, 2, 3, 5, 7, 11, 13], np.int32)   # measured outcome subset
NSEL = int(P_IDXS.shape[0])


# --------------------------------------------------------------------------
# Fused Pallas kernel: conv -> pool -> fc -> rho (chol_h) -> measurement -> gather
# --------------------------------------------------------------------------
def net_conv_kernel(pt_ref, w9_ref, w2d_ref, m1_ref, e80_ref, b1_ref,
                    w2_ref, b2_ref, abm_ref, g32_ref, eye4_ref,
                    mpk_ref, dmk_ref, fsel_ref, out_ref):
    # pt_ref:   (10, 256) im2col^T, col = q*64+p (q = 2x2 pool phase); row 9 = ones (bias tap)
    # w9_ref:   (10, 10)  conv weights [o, tap] with bias in column 9
    # w2d_ref:  (64, 80)  W2d[p, c*8+o] = fc1_w[o, c*64+p]
    # m1_ref:   (10, 80)  channel-diagonal 0/1 mask
    # e80_ref:  (80, 8)   lane-group gather (col%8 == o)
    # b1_ref:   (1, 8)
    # w2_ref:   (8, 32)   fc2 permuted/sign-folded into [A_flat | B_flat]
    # b2_ref:   (1, 32)
    # abm_ref:  (4, 32)   row i keeps lanes 4i..4i+3 and 16+4i..16+4i+3
    # g32_ref:  (32, 8)   gathers the kept lanes into [A | B] (4,8)
    # eye4_ref: (4, 4)    identity (trace mask)
    # mpk_ref:  (8, 64)   rows 0..3 = Re(M_k[c,j]), rows 4..7 = -Im(M_k[c,j]); col = j*16+k
    # dmk_ref:  (4, 64)   trace-diagonal 0/1 mask (col//16 == j)
    # fsel_ref: (64, 8)   sums over j and selects k = P_IDXS[m]
    # out_ref:  (1, 8)    P_real
    f32 = jnp.float32
    dot = lambda a, b: jnp.dot(a, b, preferred_element_type=f32)

    # ---- conv1 (+bias folded) as one MXU push contracting over the taps.
    convt = dot(w9_ref[...], pt_ref[...])                                   # (10, 256)
    # 2x2 maxpool = max over the 4 phase blocks (lane slices); ReLU after (commutes).
    ht = jnp.maximum(jnp.maximum(convt[:, 0:NPOS], convt[:, NPOS:2 * NPOS]),
                     jnp.maximum(convt[:, 2 * NPOS:3 * NPOS], convt[:, 3 * NPOS:4 * NPOS]))
    ht = jnp.maximum(ht, 0.0)                                               # (10, 64)

    # ---- fc[0]: contract over the 64 pooled positions; keep channel diagonal; reduce on MXU.
    big = dot(ht, w2d_ref[...]) * m1_ref[...]                               # (10, 80)
    ones10 = jnp.full((1, C_OUT), 1.0, f32)
    s8 = dot(dot(ones10, big), e80_ref[...])                                # (1, 8)
    a1 = jnp.maximum(s8 + b1_ref[...], 0.0)

    # ---- fc[2] fused with the chol_h selection: ab = [A.flatten() | B.flatten()],
    # where T = A + iB is the Hermitian matrix built by Rho_T('chol_h', mixed).
    ab = dot(a1, w2_ref[...]) + b2_ref[...]                                 # (1, 32)
    abm = jnp.broadcast_to(ab, (D, 2 * OUT_SIZE)) * abm_ref[...]            # (4, 32)
    AB = dot(abm, g32_ref[...])                                             # (4, 8) = [A | B]
    A = AB[:, 0:D]
    B = AB[:, D:2 * D]

    # ---- T_temp = T^H T = (A+iB)^2 (T Hermitian); its trace is real.
    t_rr = dot(A, A) - dot(B, B)                                            # (4, 4)
    t_ri = dot(A, B) + dot(B, A)                                            # (4, 4)
    tr = jnp.sum(t_rr * eye4_ref[...])
    # NOTE: like the PyTorch module, trace==0 (degenerate all-zero T) gives inf/nan.

    # ---- Measurement + P_idxs gather: P[m] = Re tr(rho @ M_{P_IDXS[m]}), rho = T_temp/tr.
    mp = mpk_ref[...]                                                       # (8, 64)
    cw = (dot(t_rr, mp[0:D]) + dot(t_ri, mp[D:2 * D])) * dmk_ref[...]       # (4, 64)
    ones4 = jnp.full((1, D), 1.0, f32)
    psel = dot(dot(ones4, cw), fsel_ref[...])                               # (1, 8)
    out_ref[...] = psel * (1.0 / tr)     # exact division: probability normalizer


def _vmem_specs(n):
    return [pl.BlockSpec(memory_space=pltpu.MemorySpace.VMEM) for _ in range(n)]


_fused_call = pl.pallas_call(
    net_conv_kernel,
    out_shape=jax.ShapeDtypeStruct((1, NSEL), jnp.float32),
    in_specs=_vmem_specs(14),
    out_specs=pl.BlockSpec(memory_space=pltpu.MemorySpace.VMEM),
)


# --------------------------------------------------------------------------
# Host-side one-time parameter packing (pure weight permutations, no per-call cost)
# --------------------------------------------------------------------------
def build_povm():
    """Deterministic tetrahedral single-qubit POVM, shape (4, 2, 2) complex."""
    s = np.array([[1, 1, 1], [1, -1, -1], [-1, 1, -1], [-1, -1, 1]], np.float64) / np.sqrt(3.0)
    sx = np.array([[0, 1], [1, 0]], np.complex128)
    sy = np.array([[0, -1j], [1j, 0]], np.complex128)
    sz = np.array([[1, 0], [0, -1]], np.complex128)
    i2 = np.eye(2, dtype=np.complex128)
    return np.stack([(i2 + s[k, 0] * sx + s[k, 1] * sy + s[k, 2] * sz) / 4.0
                     for k in range(K_POVM)])


def prepare_operands(params, M_povm, p_idxs):
    """Pack all weights/constants into kernel-friendly layouts (done once)."""
    conv_w, conv_b, fc1_w, fc1_b, fc2_w, fc2_b = [np.asarray(p, np.float64) for p in params]
    nsel = int(len(p_idxs))

    # conv: taps on lanes, channels on rows; bias folded as an extra "ones" tap.
    w9a = np.concatenate([conv_w.reshape(C_OUT, 9), conv_b.reshape(C_OUT, 1)], axis=1)  # (10,10)

    # fc1: NCHW flatten index c*64+p re-packed so the kernel contracts over positions.
    w2d = (fc1_w.reshape(OUT_SIZE_LOG, C_OUT, NPOS)
           .transpose(2, 1, 0).reshape(NPOS, FC1_WIDE))                                  # (64,80)
    b1 = fc1_b.reshape(1, OUT_SIZE_LOG)

    # fc1 reduction constants: channel-diagonal mask + lane-group gather matrix.
    fc1mask = np.zeros((C_OUT, FC1_WIDE))
    e80 = np.zeros((FC1_WIDE, OUT_SIZE_LOG))
    for c in range(C_OUT):
        fc1mask[c, c * OUT_SIZE_LOG:(c + 1) * OUT_SIZE_LOG] = 1.0
        for o in range(OUT_SIZE_LOG):
            e80[c * OUT_SIZE_LOG + o, o] = 1.0

    # fc2 fused with chol_h: A[i,j] = t[4*max+min], B[i,j] = sgn(i-j)*t[4*min+max]
    w2 = np.zeros((OUT_SIZE_LOG, 2 * OUT_SIZE))
    b2 = np.zeros((1, 2 * OUT_SIZE))
    for i in range(D):
        for j in range(D):
            ia = D * max(i, j) + min(i, j)
            ib = D * min(i, j) + max(i, j)
            sg = 1.0 if i > j else (-1.0 if i < j else 0.0)
            w2[:, D * i + j] = fc2_w[ia, :]
            b2[0, D * i + j] = fc2_b[ia]
            w2[:, OUT_SIZE + D * i + j] = sg * fc2_w[ib, :]
            b2[0, OUT_SIZE + D * i + j] = sg * fc2_b[ib]

    # A/B extraction constants.
    abmask = np.zeros((D, 2 * OUT_SIZE))
    g32 = np.zeros((2 * OUT_SIZE, 2 * D))
    for i in range(D):
        abmask[i, D * i:D * i + D] = 1.0
        abmask[i, OUT_SIZE + D * i:OUT_SIZE + D * i + D] = 1.0
    for col in range(2 * OUT_SIZE):
        if col < OUT_SIZE:
            g32[col, col % D] = 1.0
        else:
            g32[col, D + col % D] = 1.0
    eye4 = np.eye(D)

    # Measurement tables: M_full[k] = kron(M[k1], M[k2]).
    mfull = np.stack([np.kron(M_povm[k1], M_povm[k2])
                      for k1 in range(K_POVM) for k2 in range(K_POVM)])       # (16,4,4)
    mpack = np.zeros((2 * D, D * NP_ALL))
    dmask = np.zeros((D, D * NP_ALL))
    fsel = np.zeros((D * NP_ALL, nsel))
    for k in range(NP_ALL):
        for j in range(D):
            for c in range(D):
                mpack[c, j * NP_ALL + k] = mfull[k, c, j].real
                mpack[D + c, j * NP_ALL + k] = -mfull[k, c, j].imag
    for j in range(D):
        dmask[j, j * NP_ALL:(j + 1) * NP_ALL] = 1.0
    for m, k in enumerate(np.asarray(p_idxs)):
        for j in range(D):
            fsel[j * NP_ALL + int(k), m] = 1.0

    operands = tuple(jnp.asarray(a, jnp.float32) for a in
                     (w9a, w2d, fc1mask, e80, b1, w2, b2, abmask, g32, eye4,
                      mpack, dmask, fsel))
    return operands, jnp.asarray(mfull, jnp.complex64)


# --------------------------------------------------------------------------
# Forward: tiny im2col prologue (host XLA, same jit) + one fused pallas_call
# --------------------------------------------------------------------------
@jax.jit
def net_conv_forward(x, operands):
    # im2col transposed, grouped by 2x2 pool phase: pt[t, q*64+p], plus a ones row (bias tap)
    xpad = jnp.pad(x.reshape(IN_ROW, IN_COL), ((1, 1), (1, 1)))
    taps = jnp.stack([xpad[kh:kh + IN_ROW, kw:kw + IN_COL]
                      for kh in range(3) for kw in range(3)], axis=-1)        # (16,16,9)
    pt = (taps.reshape(POOL_H, 2, POOL_W, 2, 9)
          .transpose(4, 1, 3, 0, 2)
          .reshape(9, 4 * NPOS))                                              # (9, 256)
    pt = jnp.concatenate([pt, jnp.ones((1, 4 * NPOS), jnp.float32)], axis=0)  # (10, 256)

    out = _fused_call(pt, *operands)                                          # (1, NSEL)
    return out[0]


# --------------------------------------------------------------------------
# Pure-JAX reference (mirrors the PyTorch forward) for a correctness check
# --------------------------------------------------------------------------
def reference_forward(x, params, mfull_c, p_idxs):
    conv_w, conv_b, fc1_w, fc1_b, fc2_w, fc2_b = params
    xpad = jnp.pad(x.reshape(IN_ROW, IN_COL), ((1, 1), (1, 1)))
    conv = jnp.zeros((C_OUT, IN_ROW, IN_COL), jnp.float32)
    for kh in range(3):
        for kw in range(3):
            conv = conv + conv_w[:, 0, kh, kw][:, None, None] * \
                xpad[kh:kh + IN_ROW, kw:kw + IN_COL][None]
    conv = jax.nn.relu(conv + conv_b[:, None, None])
    pooled = conv.reshape(C_OUT, POOL_H, 2, POOL_W, 2).max(axis=(2, 4))
    v = pooled.reshape(1, -1)
    a1 = jax.nn.relu(v @ fc1_w.T + fc1_b)
    t = a1 @ fc2_w.T + fc2_b
    t_m = t.reshape(D, D)
    t_triu = jnp.triu(t_m, 1)
    T = jnp.tril(t_m).astype(jnp.complex64) + 1j * t_triu.T
    T = T + jnp.tril(T, -1).T.conj()
    t_temp = T.conj().T @ T
    rho = t_temp / jnp.trace(t_temp)
    p_all = jnp.real(jnp.einsum('ij,kji->k', rho, mfull_c))
    return p_all[p_idxs].astype(jnp.float32)


# --------------------------------------------------------------------------
if __name__ == "__main__":
    key = jax.random.PRNGKey(0)
    k1, k2, k3, k4, k5, k6, k7 = jax.random.split(key, 7)

    # deterministic synthetic parameters (shapes from Net_Conv.__init__)
    conv_w = jax.random.normal(k1, (C_OUT, 1, 3, 3), jnp.float32) * 0.2
    conv_b = jax.random.normal(k2, (C_OUT,), jnp.float32) * 0.1
    fc1_w = jax.random.normal(k3, (OUT_SIZE_LOG, FC_IN), jnp.float32) * 0.05
    fc1_b = jax.random.normal(k4, (OUT_SIZE_LOG,), jnp.float32) * 0.1
    fc2_w = jax.random.normal(k5, (OUT_SIZE, OUT_SIZE_LOG), jnp.float32) * 0.2
    fc2_b = jax.random.normal(k6, (OUT_SIZE,), jnp.float32) * 0.1
    params = (conv_w, conv_b, fc1_w, fc1_b, fc2_w, fc2_b)

    # measurement setup (M = tetrahedral POVM, P_IDXS = subset of outcomes)
    M = build_povm()
    operands, mfull_c = prepare_operands(params, M, P_IDXS)

    # input: X.view(1, 1, 16, 16) in the PyTorch forward
    x = jax.random.normal(k7, (IN_ROW, IN_COL), jnp.float32)

    out = jax.block_until_ready(net_conv_forward(x, operands))
    ref = jax.block_until_ready(reference_forward(x, params, mfull_c, jnp.asarray(P_IDXS)))
    np.testing.assert_allclose(np.asarray(out), np.asarray(ref), rtol=1e-2, atol=2e-4)

    print("KERNEL_OK")
</pallas_src>

<mosaic_0001>
module attributes {stable_mosaic.version = 11 : i64} {
  func.func @net_conv_kernel(%arg0: memref<10x256xf32, #tpu.memory_space<vmem>>, %arg1: memref<10x10xf32, #tpu.memory_space<vmem>>, %arg2: memref<64x80xf32, #tpu.memory_space<vmem>>, %arg3: memref<10x80xf32, #tpu.memory_space<vmem>>, %arg4: memref<80x8xf32, #tpu.memory_space<vmem>>, %arg5: memref<1x8xf32, #tpu.memory_space<vmem>>, %arg6: memref<8x32xf32, #tpu.memory_space<vmem>>, %arg7: memref<1x32xf32, #tpu.memory_space<vmem>>, %arg8: memref<4x32xf32, #tpu.memory_space<vmem>>, %arg9: memref<32x8xf32, #tpu.memory_space<vmem>>, %arg10: memref<4x4xf32, #tpu.memory_space<vmem>>, %arg11: memref<8x64xf32, #tpu.memory_space<vmem>>, %arg12: memref<4x64xf32, #tpu.memory_space<vmem>>, %arg13: memref<64x8xf32, #tpu.memory_space<vmem>>, %arg14: memref<1x8xf32, #tpu.memory_space<vmem>>) attributes {dimension_semantics = [], scalar_prefetch = 0 : i64, scratch_operands = 0 : i64, tpu.core_type = #tpu.core_type<tc>} {
    %c0 = arith.constant 0 : index
    %c0_0 = arith.constant 0 : index
    %0 = vector.load %arg1[%c0, %c0_0] : memref<10x10xf32, #tpu.memory_space<vmem>>, vector<10x10xf32>
    %c0_1 = arith.constant 0 : index
    %c0_2 = arith.constant 0 : index
    %1 = vector.load %arg0[%c0_1, %c0_2] : memref<10x256xf32, #tpu.memory_space<vmem>>, vector<10x256xf32>
    %cst = arith.constant dense<0.000000e+00> : vector<10x256xf32>
    %2 = tpu.matmul %0, %1, %cst {dimension_numbers = #tpu.dot_dimension_numbers<[1], [0], [0], [1], [0, 0, 1, 1], [], []>} : vector<10x10xf32>, vector<10x256xf32>, vector<10x256xf32> -> vector<10x256xf32>
    %3 = vector.extract_strided_slice %2 {offsets = [0, 0], sizes = [10, 64], strides = [1, 1]} : vector<10x256xf32> to vector<10x64xf32>
    %4 = vector.extract_strided_slice %2 {offsets = [0, 64], sizes = [10, 64], strides = [1, 1]} : vector<10x256xf32> to vector<10x64xf32>
    %5 = arith.maximumf %3, %4 : vector<10x64xf32>
    %6 = vector.extract_strided_slice %2 {offsets = [0, 128], sizes = [10, 64], strides = [1, 1]} : vector<10x256xf32> to vector<10x64xf32>
    %7 = vector.extract_strided_slice %2 {offsets = [0, 192], sizes = [10, 64], strides = [1, 1]} : vector<10x256xf32> to vector<10x64xf32>
    %8 = arith.maximumf %6, %7 : vector<10x64xf32>
    %9 = arith.maximumf %5, %8 : vector<10x64xf32>
    %cst_3 = arith.constant 0.000000e+00 : f32
    %10 = vector.broadcast %cst_3 : f32 to vector<10x64xf32>
    %11 = arith.maximumf %9, %10 : vector<10x64xf32>
    %c0_4 = arith.constant 0 : index
    %c0_5 = arith.constant 0 : index
    %12 = vector.load %arg2[%c0_4, %c0_5] : memref<64x80xf32, #tpu.memory_space<vmem>>, vector<64x80xf32>
    %cst_6 = arith.constant dense<0.000000e+00> : vector<10x80xf32>
    %13 = tpu.matmul %11, %12, %cst_6 {dimension_numbers = #tpu.dot_dimension_numbers<[1], [0], [0], [1], [0, 0, 1, 1], [], []>} : vector<10x64xf32>, vector<64x80xf32>, vector<10x80xf32> -> vector<10x80xf32>
    %c0_7 = arith.constant 0 : index
    %c0_8 = arith.constant 0 : index
    %14 = vector.load %arg3[%c0_7, %c0_8] : memref<10x80xf32, #tpu.memory_space<vmem>>, vector<10x80xf32>
    %15 = arith.mulf %13, %14 : vector<10x80xf32>
    %cst_9 = arith.constant 1.000000e+00 : f32
    %16 = vector.broadcast %cst_9 : f32 to vector<1x10xf32>
    %cst_10 = arith.constant dense<0.000000e+00> : vector<1x80xf32>
    %17 = tpu.matmul %16, %15, %cst_10 {dimension_numbers = #tpu.dot_dimension_numbers<[1], [0], [0], [1], [0, 0, 1, 1], [], []>} : vector<1x10xf32>, vector<10x80xf32>, vector<1x80xf32> -> vector<1x80xf32>
    %c0_11 = arith.constant 0 : index
    %c0_12 = arith.constant 0 : index
    %18 = vector.load %arg4[%c0_11, %c0_12] : memref<80x8xf32, #tpu.memory_space<vmem>>, vector<80x8xf32>
    %cst_13 = arith.constant dense<0.000000e+00> : vector<1x8xf32>
    %19 = tpu.matmul %17, %18, %cst_13 {dimension_numbers = #tpu.dot_dimension_numbers<[1], [0], [0], [1], [0, 0, 1, 1], [], []>} : vector<1x80xf32>, vector<80x8xf32>, vector<1x8xf32> -> vector<1x8xf32>
    %c0_14 = arith.constant 0 : index
    %c0_15 = arith.constant 0 : index
    %20 = vector.load %arg5[%c0_14, %c0_15] : memref<1x8xf32, #tpu.memory_space<vmem>>, vector<1x8xf32>
    %21 = arith.addf %19, %20 : vector<1x8xf32>
    %cst_16 = arith.constant 0.000000e+00 : f32
    %22 = vector.broadcast %cst_16 : f32 to vector<1x8xf32>
    %23 = arith.maximumf %21, %22 : vector<1x8xf32>
    %c0_17 = arith.constant 0 : index
    %c0_18 = arith.constant 0 : index
    %24 = vector.load %arg6[%c0_17, %c0_18] : memref<8x32xf32, #tpu.memory_space<vmem>>, vector<8x32xf32>
    %cst_19 = arith.constant dense<0.000000e+00> : vector<1x32xf32>
    %25 = tpu.matmul %23, %24, %cst_19 {dimension_numbers = #tpu.dot_dimension_numbers<[1], [0], [0], [1], [0, 0, 1, 1], [], []>} : vector<1x8xf32>, vector<8x32xf32>, vector<1x32xf32> -> vector<1x32xf32>
    %c0_20 = arith.constant 0 : index
    %c0_21 = arith.constant 0 : index
    %26 = vector.load %arg7[%c0_20, %c0_21] : memref<1x32xf32, #tpu.memory_space<vmem>>, vector<1x32xf32>
    %27 = arith.addf %25, %26 : vector<1x32xf32>
    %28 = vector.shape_cast %27 : vector<1x32xf32> to vector<1x32xf32>
    %29 = vector.broadcast %28 : vector<1x32xf32> to vector<4x32xf32>
    %c0_22 = arith.constant 0 : index
    %c0_23 = arith.constant 0 : index
    %30 = vector.load %arg8[%c0_22, %c0_23] : memref<4x32xf32, #tpu.memory_space<vmem>>, vector<4x32xf32>
    %31 = arith.mulf %29, %30 : vector<4x32xf32>
    %c0_24 = arith.constant 0 : index
    %c0_25 = arith.constant 0 : index
    %32 = vector.load %arg9[%c0_24, %c0_25] : memref<32x8xf32, #tpu.memory_space<vmem>>, vector<32x8xf32>
    %cst_26 = arith.constant dense<0.000000e+00> : vector<4x8xf32>
    %33 = tpu.matmul %31, %32, %cst_26 {dimension_numbers = #tpu.dot_dimension_numbers<[1], [0], [0], [1], [0, 0, 1, 1], [], []>} : vector<4x32xf32>, vector<32x8xf32>, vector<4x8xf32> -> vector<4x8xf32>
    %34 = vector.extract_strided_slice %33 {offsets = [0, 0], sizes = [4, 4], strides = [1, 1]} : vector<4x8xf32> to vector<4x4xf32>
    %35 = vector.extract_strided_slice %33 {offsets = [0, 4], sizes = [4, 4], strides = [1, 1]} : vector<4x8xf32> to vector<4x4xf32>
    %cst_27 = arith.constant dense<0.000000e+00> : vector<4x4xf32>
    %36 = tpu.matmul %34, %34, %cst_27 {dimension_numbers = #tpu.dot_dimension_numbers<[1], [0], [0], [1], [0, 0, 1, 1], [], []>} : vector<4x4xf32>, vector<4x4xf32>, vector<4x4xf32> -> vector<4x4xf32>
    %cst_28 = arith.constant dense<0.000000e+00> : vector<4x4xf32>
    %37 = tpu.matmul %35, %35, %cst_28 {dimension_numbers = #tpu.dot_dimension_numbers<[1], [0], [0], [1], [0, 0, 1, 1], [], []>} : vector<4x4xf32>, vector<4x4xf32>, vector<4x4xf32> -> vector<4x4xf32>
    %38 = arith.subf %36, %37 : vector<4x4xf32>
    %cst_29 = arith.constant dense<0.000000e+00> : vector<4x4xf32>
    %39 = tpu.matmul %34, %35, %cst_29 {dimension_numbers = #tpu.dot_dimension_numbers<[1], [0], [0], [1], [0, 0, 1, 1], [], []>} : vector<4x4xf32>, vector<4x4xf32>, vector<4x4xf32> -> vector<4x4xf32>
    %cst_30 = arith.constant dense<0.000000e+00> : vector<4x4xf32>
    %40 = tpu.matmul %35, %34, %cst_30 {dimension_numbers = #tpu.dot_dimension_numbers<[1], [0], [0], [1], [0, 0, 1, 1], [], []>} : vector<4x4xf32>, vector<4x4xf32>, vector<4x4xf32> -> vector<4x4xf32>
    %41 = arith.addf %39, %40 : vector<4x4xf32>
    %c0_31 = arith.constant 0 : index
    %c0_32 = arith.constant 0 : index
    %42 = vector.load %arg10[%c0_31, %c0_32] : memref<4x4xf32, #tpu.memory_space<vmem>>, vector<4x4xf32>
    %43 = arith.mulf %38, %42 : vector<4x4xf32>
    %44 = vector.shape_cast %43 : vector<4x4xf32> to vector<1x4x4xf32>
    %cst_33 = arith.constant dense<0.000000e+00> : vector<1xf32>
    %45 = vector.multi_reduction <add>, %44, %cst_33 [1, 2] : vector<1x4x4xf32> to vector<1xf32>
    %46 = vector.shape_cast %45 : vector<1xf32> to vector<1x1x1xf32>
    %47 = vector.extract %46[0, 0, 0] : f32 from vector<1x1x1xf32>
    %c0_34 = arith.constant 0 : index
    %c0_35 = arith.constant 0 : index
    %48 = vector.load %arg11[%c0_34, %c0_35] : memref<8x64xf32, #tpu.memory_space<vmem>>, vector<8x64xf32>
    %49 = vector.extract_strided_slice %48 {offsets = [0, 0], sizes = [4, 64], strides = [1, 1]} : vector<8x64xf32> to vector<4x64xf32>
    %cst_36 = arith.constant dense<0.000000e+00> : vector<4x64xf32>
    %50 = tpu.matmul %38, %49, %cst_36 {dimension_numbers = #tpu.dot_dimension_numbers<[1], [0], [0], [1], [0, 0, 1, 1], [], []>} : vector<4x4xf32>, vector<4x64xf32>, vector<4x64xf32> -> vector<4x64xf32>
    %51 = vector.extract_strided_slice %48 {offsets = [4, 0], sizes = [4, 64], strides = [1, 1]} : vector<8x64xf32> to vector<4x64xf32>
    %cst_37 = arith.constant dense<0.000000e+00> : vector<4x64xf32>
    %52 = tpu.matmul %41, %51, %cst_37 {dimension_numbers = #tpu.dot_dimension_numbers<[1], [0], [0], [1], [0, 0, 1, 1], [], []>} : vector<4x4xf32>, vector<4x64xf32>, vector<4x64xf32> -> vector<4x64xf32>
    %53 = arith.addf %50, %52 : vector<4x64xf32>
    %c0_38 = arith.constant 0 : index
    %c0_39 = arith.constant 0 : index
    %54 = vector.load %arg12[%c0_38, %c0_39] : memref<4x64xf32, #tpu.memory_space<vmem>>, vector<4x64xf32>
    %55 = arith.mulf %53, %54 : vector<4x64xf32>
    %cst_40 = arith.constant 1.000000e+00 : f32
    %56 = vector.broadcast %cst_40 : f32 to vector<1x4xf32>
    %cst_41 = arith.constant dense<0.000000e+00> : vector<1x64xf32>
    %57 = tpu.matmul %56, %55, %cst_41 {dimension_numbers = #tpu.dot_dimension_numbers<[1], [0], [0], [1], [0, 0, 1, 1], [], []>} : vector<1x4xf32>, vector<4x64xf32>, vector<1x64xf32> -> vector<1x64xf32>
    %c0_42 = arith.constant 0 : index
    %c0_43 = arith.constant 0 : index
    %58 = vector.load %arg13[%c0_42, %c0_43] : memref<64x8xf32, #tpu.memory_space<vmem>>, vector<64x8xf32>
    %cst_44 = arith.constant dense<0.000000e+00> : vector<1x8xf32>
    %59 = tpu.matmul %57, %58, %cst_44 {dimension_numbers = #tpu.dot_dimension_numbers<[1], [0], [0], [1], [0, 0, 1, 1], [], []>} : vector<1x64xf32>, vector<64x8xf32>, vector<1x8xf32> -> vector<1x8xf32>
    %cst_45 = arith.constant 1.000000e+00 : f32
    %60 = arith.divf %cst_45, %47 : f32
    %61 = vector.broadcast %60 : f32 to vector<1x8xf32>
    %62 = arith.mulf %59, %61 : vector<1x8xf32>
    %c0_46 = arith.constant 0 : index
    %c0_47 = arith.constant 0 : index
    %63 = vector.load %arg14[%c0_46, %c0_47] : memref<1x8xf32, #tpu.memory_space<vmem>>, vector<1x8xf32>
    tpu.vector_store %arg14[%c0_46, %c0_47], %62 {strides = array<i32>} : memref<1x8xf32, #tpu.memory_space<vmem>>, vector<1x8xf32>,
    return
  }
}

</mosaic_0001>

<llo_original>
// kernel: net_conv_forward.1
$region0: #{net_conv_forward.1}
  #allocation0 [shape = 'u32[]', space=smem, size = 0x4, offset = 0x4, fixed_abs, tag = 'smem constant byte address 0x4 - core index']
  #allocation1 [shape = 'u32[144,128]{1,0:T(1,128)}', space=vmem, size = 0x12000, scoped, tag = 'internal scratch']
  %s0 = inlined_call_operand.vmem [shape: f32[10,256], index: 0, kind: input, shape index: {}]
  %s1 = inlined_call_operand.vmem [shape: f32[10,10], index: 1, kind: input, shape index: {}]
  %s2 = inlined_call_operand.vmem [shape: f32[64,80], index: 2, kind: input, shape index: {}]
  %s3 = inlined_call_operand.vmem [shape: f32[10,80], index: 3, kind: input, shape index: {}]
  %s4 = inlined_call_operand.vmem [shape: f32[80,8], index: 4, kind: input, shape index: {}]
  %s5 = inlined_call_operand.vmem [shape: f32[1,8], index: 5, kind: input, shape index: {}]
  %s6 = inlined_call_operand.vmem [shape: f32[8,32], index: 6, kind: input, shape index: {}]
  %s7 = inlined_call_operand.vmem [shape: f32[1,32], index: 7, kind: input, shape index: {}]
  %s8 = inlined_call_operand.vmem [shape: f32[4,32], index: 8, kind: input, shape index: {}]
  %s9 = inlined_call_operand.vmem [shape: f32[32,8], index: 9, kind: input, shape index: {}]
  %s10 = inlined_call_operand.vmem [shape: f32[4,4], index: 10, kind: input, shape index: {}]
  %s11 = inlined_call_operand.vmem [shape: f32[8,64], index: 11, kind: input, shape index: {}]
  %s12 = inlined_call_operand.vmem [shape: f32[4,64], index: 12, kind: input, shape index: {}]
  %s13 = inlined_call_operand.vmem [shape: f32[64,8], index: 13, kind: input, shape index: {}]
  %s14 = inlined_call_operand.hbm [shape: f32[1,8], index: 14, kind: output, shape index: {}]
  %s15 = sld [smem:[#allocation0]]
  $region66: #{net_conv_forward.1} parent=0
    _
  %s17 = ssub.s32 1, %s15
  %s18 = scalar_select 0, %s17, %s15
  $region1: #{net_conv_forward.1} parent=0
    #allocation2 [shape = 'u8[512]{0}', space=vmem, size = 0x400, scoped, tag = 'output window, operand 0, single buffered']
    #allocation3 [shape = 's32[1]{0}', space=sflag, size = 0x4, scoped, tag = 'scoped memory for net_conv_forward.1']
    %19 = vsyncpa [#allocation3], 0
    // Predicated region
    $region2: #{net_conv_forward.1} parent=1 // pred_check
      _
    $region3: #{net_conv_forward.1} parent=1 // pred_check_branch
      %21 = sbr.rel (0) target = $region5
    $region4: #{net_conv_forward.1} parent=1 // pred_region
      _
    $region5: #{net_conv_forward.1} parent=1 // pred_fallthru
      _
    // Predicated region
    $region6: #{net_conv_forward.1} parent=1 // pred_check
      _
    $region7: #{net_conv_forward.1} parent=1 // pred_check_branch
      %23 = sbr.rel (0) target = $region9
    $region8: #{net_conv_forward.1} parent=1 // pred_region
      _
    $region9: #{net_conv_forward.1} parent=1 // pred_fallthru
      _
    // Predicated region
    $region10: #{net_conv_forward.1} parent=1 // pred_check
      _
    $region11: #{net_conv_forward.1} parent=1 // pred_check_branch
      %25 = sbr.rel (0) target = $region13
    $region12: #{net_conv_forward.1} parent=1 // pred_region
      _
    $region13: #{net_conv_forward.1} parent=1 // pred_fallthru
      _
    // Predicated region
    $region14: #{net_conv_forward.1} parent=1 // pred_check
      _
    $region15: #{net_conv_forward.1} parent=1 // pred_check_branch
      %27 = sbr.rel (0) target = $region17
    $region16: #{net_conv_forward.1} parent=1 // pred_region
      _
    $region17: #{net_conv_forward.1} parent=1 // pred_fallthru
      _
    // Predicated region
    $region18: #{net_conv_forward.1} parent=1 // pred_check
      _
    $region19: #{net_conv_forward.1} parent=1 // pred_check_branch
      %29 = sbr.rel (0) target = $region21
    $region20: #{net_conv_forward.1} parent=1 // pred_region
      _
    $region21: #{net_conv_forward.1} parent=1 // pred_fallthru
      _
    // Predicated region
    $region22: #{net_conv_forward.1} parent=1 // pred_check
      _
    $region23: #{net_conv_forward.1} parent=1 // pred_check_branch
      %31 = sbr.rel (0) target = $region25
    $region24: #{net_conv_forward.1} parent=1 // pred_region
      _
    $region25: #{net_conv_forward.1} parent=1 // pred_fallthru
      _
    // Predicated region
    $region26: #{net_conv_forward.1} parent=1 // pred_check
      _
    $region27: #{net_conv_forward.1} parent=1 // pred_check_branch
      %33 = sbr.rel (0) target = $region29
    $region28: #{net_conv_forward.1} parent=1 // pred_region
      _
    $region29: #{net_conv_forward.1} parent=1 // pred_fallthru
      _
    // Predicated region
    $region30: #{net_conv_forward.1} parent=1 // pred_check
      _
    $region31: #{net_conv_forward.1} parent=1 // pred_check_branch
      %35 = sbr.rel (0) target = $region33
    $region32: #{net_conv_forward.1} parent=1 // pred_region
      _
    $region33: #{net_conv_forward.1} parent=1 // pred_fallthru
      _
    // Predicated region
    $region34: #{net_conv_forward.1} parent=1 // pred_check
      _
    $region35: #{net_conv_forward.1} parent=1 // pred_check_branch
      %37 = sbr.rel (0) target = $region37
    $region36: #{net_conv_forward.1} parent=1 // pred_region
      _
    $region37: #{net_conv_forward.1} parent=1 // pred_fallthru
      _
    // Predicated region
    $region38: #{net_conv_forward.1} parent=1 // pred_check
      _
    $region39: #{net_conv_forward.1} parent=1 // pred_check_branch
      %39 = sbr.rel (0) target = $region41
    $region40: #{net_conv_forward.1} parent=1 // pred_region
      _
    $region41: #{net_conv_forward.1} parent=1 // pred_fallthru
      _
    // Predicated region
    $region42: #{net_conv_forward.1} parent=1 // pred_check
      _
    $region43: #{net_conv_forward.1} parent=1 // pred_check_branch
      %41 = sbr.rel (0) target = $region45
    $region44: #{net_conv_forward.1} parent=1 // pred_region
      _
    $region45: #{net_conv_forward.1} parent=1 // pred_fallthru
      _
    // Predicated region
    $region46: #{net_conv_forward.1} parent=1 // pred_check
      _
    $region47: #{net_conv_forward.1} parent=1 // pred_check_branch
      %43 = sbr.rel (0) target = $region49
    $region48: #{net_conv_forward.1} parent=1 // pred_region
      _
    $region49: #{net_conv_forward.1} parent=1 // pred_fallthru
      _
    // Predicated region
    $region50: #{net_conv_forward.1} parent=1 // pred_check
      _
    $region51: #{net_conv_forward.1} parent=1 // pred_check_branch
      %45 = sbr.rel (0) target = $region53
    $region52: #{net_conv_forward.1} parent=1 // pred_region
      _
    $region53: #{net_conv_forward.1} parent=1 // pred_fallthru
      _
    // Predicated region
    $region54: #{net_conv_forward.1} parent=1 // pred_check
      _
    $region55: #{net_conv_forward.1} parent=1 // pred_check_branch
      %47 = sbr.rel (0) target = $region57
    $region56: #{net_conv_forward.1} parent=1 // pred_region
      _
    $region57: #{net_conv_forward.1} parent=1 // pred_fallthru
      _
    %v48 = vld [vmem:[%s1] sm:$0xff]
    %v49 = vld [vmem:[%s1 + $0x8] sm:$0x3]
    %v50 = vld [vmem:[%s0] sm:$0xff]
    %v51 = vld [vmem:[%s0 + $0x8] sm:$0xff]
    %v52 = vld [vmem:[%s0 + $0x10] sm:$0x3]
    %v53 = vld [vmem:[%s0 + $0x18] sm:$0x3]
    %vm54 = vcmask 80896
    %v56 = vsel %vm54, %v48, 0
    %v59 = vsel %vm54, %v49, 0
    %vm61 = vcmask 1041408
    %v63 = vsel %vm61, %v52, 0
    %v66 = vsel %vm61, %v53, 0
    %68 = vmatprep.subr.mxu0 %v51
    %69 = vmatpush1.msra.mxu0 %v50
    %70 = vmatprep.subr.mxu0 %v66
    %71 = vmatpush1.msra.mxu0 %v63
    %72 = vmatprep.subr.mxu0 0.0
    %73 = vmatpush1.msra.mxu0 0.0
    %74 = vmatprep.subr.mxu0 0.0
    %75 = vmatpush1.msra.mxu0 0.0
    %76 = vmatprep.subr.mxu0 0.0
    %77 = vmatpush1.msra.mxu0 0.0
    %78 = vmatprep.subr.mxu0 0.0
    %79 = vmatpush1.msra.mxu0 0.0
    %80 = vmatprep.subr.mxu0 0.0
    %81 = vmatpush1.msra.mxu0 0.0
    %82 = vmatprep.subr.mxu0 0.0
    %83 = vmatpush1.msra.mxu0 0.0
    %84 = vmatprep.subr.mxu0 0.0
    %85 = vmatpush1.msra.mxu0 0.0
    %86 = vmatprep.subr.mxu0 0.0
    %87 = vmatpush1.msra.mxu0 0.0
    %88 = vmatprep.subr.mxu0 0.0
    %89 = vmatpush1.msra.mxu0 0.0
    %90 = vmatprep.subr.mxu0 0.0
    %91 = vmatpush1.msra.mxu0 0.0
    %92 = vmatprep.subr.mxu0 0.0
    %93 = vmatpush1.msra.mxu0 0.0
    %94 = vmatprep.subr.mxu0 0.0
    %95 = vmatpush1.msra.mxu0 0.0
    %96 = vmatprep.subr.mxu0 0.0
    %97 = vmatpush1.msra.mxu0 0.0
    %98 = vmatprep.subr.mxu0 0.0
    %99 = vmatpush1.msra.mxu0 0.0
    %100 = vmatprep.subr.mxu0 0.0
    %101 = vmatpush1.msra.mxu0 0.0
    %102 = vmatprep.subr.mxu0 0.0
    %103 = vmatpush1.msra.mxu0 0.0
    %104 = vmatprep.subr.mxu0 0.0
    %105 = vmatpush1.msra.mxu0 0.0
    %106 = vmatprep.subr.mxu0 0.0
    %107 = vmatpush1.msra.mxu0 0.0
    %108 = vmatprep.subr.mxu0 0.0
    %109 = vmatpush1.msra.mxu0 0.0
    %110 = vmatprep.subr.mxu0 0.0
    %111 = vmatpush1.msra.mxu0 0.0
    %112 = vmatprep.subr.mxu0 0.0
    %113 = vmatpush1.msra.mxu0 0.0
    %114 = vmatprep.subr.mxu0 0.0
    %115 = vmatpush1.msra.mxu0 0.0
    %116 = vmatprep.subr.mxu0 0.0
    %117 = vmatpush1.msra.mxu0 0.0
    %118 = vmatprep.subr.mxu0 0.0
    %119 = vmatpush1.msra.mxu0 0.0
    %120 = vmatprep.subr.mxu0 0.0
    %121 = vmatpush1.msra.mxu0 0.0
    %122 = vmatprep.subr.mxu0 0.0
    %123 = vmatpush1.msra.mxu0 0.0
    %124 = vmatprep.subr.mxu0 0.0
    %125 = vmatpush1.msra.mxu0 0.0
    %126 = vmatprep.subr.mxu0 0.0
    %127 = vmatpush1.msra.mxu0 0.0
    %128 = vmatprep.subr.mxu0 0.0
    %129 = vmatpush1.msra.mxu0 0.0
    %130 = vmatprep.subr.mxu0 0.0
    %131 = vmatpush1.msra.mxu0 0.0
    %132 = vmatprep.mubr.f32.mxu0 0.0
    %133 = vmatmul.mubr.f32.gmra.mrb[0].mxu0 %v56
    %v134 = vpop.f32.mrb[0].mxu0
    %v135 = vadd.f32 0.0, %v134
    %v136 = vpop.f32.mrb[0].mxu0
    %v137 = vadd.f32 0.0, %v136
    %138 = vmatprep.mubr.f32.mxu0 0.0
    %139 = vmatmul.mubr.f32.gmra.mrb[0].mxu0 %v59
    %v140 = vpop.f32.mrb[0].mxu0
    %v141 = vadd.f32 0.0, %v140
    %v142 = vpop.f32.mrb[0].mxu0
    %v143 = vadd.f32 0.0, %v142
    %144 = vdwg.mxu0
    %147 = vrot.lane.b32.xlu0 %v135, 64
    %v148 = vpop.permute.xlu0 %147
    %149 = vrot.lane.b32.xlu0 %v141, 64
    %v150 = vpop.permute.xlu0 %149
    %v153 = vmax.f32 %v135, %v148
    %v154 = vmax.f32 %v141, %v150
    %157 = vrot.lane.b32.xlu0 %v137, 64
    %v158 = vpop.permute.xlu0 %157
    %159 = vrot.lane.b32.xlu0 %v143, 64
    %v160 = vpop.permute.xlu0 %159
    %v163 = vmax.f32 %v137, %v158
    %v164 = vmax.f32 %v143, %v160
    %v165 = vmax.f32 %v153, %v163
    %v166 = vmax.f32 %v154, %v164
    %v167 = vmax.f32 %v165, 0.0
    %v168 = vmax.f32 %v166, 0.0
    %v169 = vld [vmem:[%s2] sm:$0xff]
    %v170 = vld [vmem:[%s2 + $0x8] sm:$0xff]
    %v171 = vld [vmem:[%s2 + $0x10] sm:$0xff]
    %v172 = vld [vmem:[%s2 + $0x18] sm:$0xff]
    %v173 = vld [vmem:[%s2 + $0x20] sm:$0xff]
    %v174 = vld [vmem:[%s2 + $0x28] sm:$0xff]
    %v175 = vld [vmem:[%s2 + $0x30] sm:$0xff]
    %v176 = vld [vmem:[%s2 + $0x38] sm:$0xff]
    %vm177 = vcmask 523264
    %v179 = vsel %vm177, %v167, 0
    %v182 = vsel %vm177, %v168, 0
    %184 = vmatprep.subr.mxu0 0.0
    %185 = vmatpush1.msra.mxu0 %v169
    %186 = vmatprep.subr.mxu0 0.0
    %187 = vmatpush1.msra.mxu0 %v170
    %188 = vmatprep.subr.mxu0 0.0
    %189 = vmatpush1.msra.mxu0 %v171
    %190 = vmatprep.subr.mxu0 0.0
    %191 = vmatpush1.msra.mxu0 %v172
    %192 = vmatprep.subr.mxu0 0.0
    %193 = vmatpush1.msra.mxu0 %v173
    %194 = vmatprep.subr.mxu0 0.0
    %195 = vmatpush1.msra.mxu0 %v174
    %196 = vmatprep.subr.mxu0 0.0
    %197 = vmatpush1.msra.mxu0 %v175
    %198 = vmatprep.subr.mxu0 0.0
    %199 = vmatpush1.msra.mxu0 %v176
    %200 = vmatprep.subr.mxu0 0.0
    %201 = vmatpush1.msra.mxu0 0.0
    %202 = vmatprep.subr.mxu0 0.0
    %203 = vmatpush1.msra.mxu0 0.0
    %204 = vmatprep.subr.mxu0 0.0
    %205 = vmatpush1.msra.mxu0 0.0
    %206 = vmatprep.subr.mxu0 0.0
    %207 = vmatpush1.msra.mxu0 0.0
    %208 = vmatprep.subr.mxu0 0.0
    %209 = vmatpush1.msra.mxu0 0.0
    %210 = vmatprep.subr.mxu0 0.0
    %211 = vmatpush1.msra.mxu0 0.0
    %212 = vmatprep.subr.mxu0 0.0
    %213 = vmatpush1.msra.mxu0 0.0
    %214 = vmatprep.subr.mxu0 0.0
    %215 = vmatpush1.msra.mxu0 0.0
    %216 = vmatprep.subr.mxu0 0.0
    %217 = vmatpush1.msra.mxu0 0.0
    %218 = vmatprep.subr.mxu0 0.0
    %219 = vmatpush1.msra.mxu0 0.0
    %220 = vmatprep.subr.mxu0 0.0
    %221 = vmatpush1.msra.mxu0 0.0
    %222 = vmatprep.subr.mxu0 0.0
    %223 = vmatpush1.msra.mxu0 0.0
    %224 = vmatprep.subr.mxu0 0.0
    %225 = vmatpush1.msra.mxu0 0.0
    %226 = vmatprep.subr.mxu0 0.0
    %227 = vmatpush1.msra.mxu0 0.0
    %228 = vmatprep.subr.mxu0 0.0
    %229 = vmatpush1.msra.mxu0 0.0
    %230 = vmatprep.subr.mxu0 0.0
    %231 = vmatpush1.msra.mxu0 0.0
    %232 = vmatprep.subr.mxu0 0.0
    %233 = vmatpush1.msra.mxu0 0.0
    %234 = vmatprep.subr.mxu0 0.0
    %235 = vmatpush1.msra.mxu0 0.0
    %236 = vmatprep.subr.mxu0 0.0
    %237 = vmatpush1.msra.mxu0 0.0
    %238 = vmatprep.subr.mxu0 0.0
    %239 = vmatpush1.msra.mxu0 0.0
    %240 = vmatprep.subr.mxu0 0.0
    %241 = vmatpush1.msra.mxu0 0.0
    %242 = vmatprep.subr.mxu0 0.0
    %243 = vmatpush1.msra.mxu0 0.0
    %244 = vmatprep.subr.mxu0 0.0
    %245 = vmatpush1.msra.mxu0 0.0
    %246 = vmatprep.subr.mxu0 0.0
    %247 = vmatpush1.msra.mxu0 0.0
    %248 = vmatprep.mubr.f32.mxu0 0.0
    %249 = vmatmul.mubr.f32.gmra.mrb[0].mxu0 %v179
    %v250 = vpop.f32.mrb[0].mxu0
    %v251 = vadd.f32 0.0, %v250
    %v252 = vpop.f32.mrb[0].mxu0
    %253 = vmatprep.mubr.f32.mxu0 0.0
    %254 = vmatmul.mubr.f32.gmra.mrb[0].mxu0 %v182
    %v255 = vpop.f32.mrb[0].mxu0
    %v256 = vadd.f32 0.0, %v255
    %v257 = vpop.f32.mrb[0].mxu0
    %258 = vdwg.mxu0
    %v259 = vld [vmem:[%s3] sm:$0xff]
    %v260 = vld [vmem:[%s3 + $0x8] sm:$0x3]
    %v261 = vmul.f32 %v251, %v259
    %v262 = vmul.f32 %v256, %v260
    %v264 = vsel %vm54, 1.0, 0
    %v267 = vsel %vm61, %v262, 0
    %269 = vmatprep.subr.mxu0 0.0
    %270 = vmatpush1.msra.mxu0 %v261
    %271 = vmatprep.subr.mxu0 0.0
    %272 = vmatpush1.msra.mxu0 %v267
    %273 = vmatprep.subr.mxu0 0.0
    %274 = vmatpush1.msra.mxu0 0.0
    %275 = vmatprep.subr.mxu0 0.0
    %276 = vmatpush1.msra.mxu0 0.0
    %277 = vmatprep.subr.mxu0 0.0
    %278 = vmatpush1.msra.mxu0 0.0
    %279 = vmatprep.subr.mxu0 0.0
    %280 = vmatpush1.msra.mxu0 0.0
    %281 = vmatprep.subr.mxu0 0.0
    %282 = vmatpush1.msra.mxu0 0.0
    %283 = vmatprep.subr.mxu0 0.0
    %284 = vmatpush1.msra.mxu0 0.0
    %285 = vmatprep.subr.mxu0 0.0
    %286 = vmatpush1.msra.mxu0 0.0
    %287 = vmatprep.subr.mxu0 0.0
    %288 = vmatpush1.msra.mxu0 0.0
    %289 = vmatprep.subr.mxu0 0.0
    %290 = vmatpush1.msra.mxu0 0.0
    %291 = vmatprep.subr.mxu0 0.0
    %292 = vmatpush1.msra.mxu0 0.0
    %293 = vmatprep.subr.mxu0 0.0
    %294 = vmatpush1.msra.mxu0 0.0
    %295 = vmatprep.subr.mxu0 0.0
    %296 = vmatpush1.msra.mxu0 0.0
    %297 = vmatprep.subr.mxu0 0.0
    %298 = vmatpush1.msra.mxu0 0.0
    %299 = vmatprep.subr.mxu0 0.0
    %300 = vmatpush1.msra.mxu0 0.0
    %301 = vmatprep.subr.mxu0 0.0
    %302 = vmatpush1.msra.mxu0 0.0
    %303 = vmatprep.subr.mxu0 0.0
    %304 = vmatpush1.msra.mxu0 0.0
    %305 = vmatprep.subr.mxu0 0.0
    %306 = vmatpush1.msra.mxu0 0.0
    %307 = vmatprep.subr.mxu0 0.0
    %308 = vmatpush1.msra.mxu0 0.0
    %309 = vmatprep.subr.mxu0 0.0
    %310 = vmatpush1.msra.mxu0 0.0
    %311 = vmatprep.subr.mxu0 0.0
    %312 = vmatpush1.msra.mxu0 0.0
    %313 = vmatprep.subr.mxu0 0.0
    %314 = vmatpush1.msra.mxu0 0.0
    %315 = vmatprep.subr.mxu0 0.0
    %316 = vmatpush1.msra.mxu0 0.0
    %317 = vmatprep.subr.mxu0 0.0
    %318 = vmatpush1.msra.mxu0 0.0
    %319 = vmatprep.subr.mxu0 0.0
    %320 = vmatpush1.msra.mxu0 0.0
    %321 = vmatprep.subr.mxu0 0.0
    %322 = vmatpush1.msra.mxu0 0.0
    %323 = vmatprep.subr.mxu0 0.0
    %324 = vmatpush1.msra.mxu0 0.0
    %325 = vmatprep.subr.mxu0 0.0
    %326 = vmatpush1.msra.mxu0 0.0
    %327 = vmatprep.subr.mxu0 0.0
    %328 = vmatpush1.msra.mxu0 0.0
    %329 = vmatprep.subr.mxu0 0.0
    %330 = vmatpush1.msra.mxu0 0.0
    %331 = vmatprep.subr.mxu0 0.0
    %332 = vmatpush1.msra.mxu0 0.0
    %333 = vmatprep.mubr.f32.mxu0 0.0
    %334 = vmatmul.mubr.f32.gmra.mrb[0].mxu0 %v264
    %v335 = vpop.f32.mrb[0].mxu0
    %v336 = vadd.f32 0.0, %v335
    %v337 = vpop.f32.mrb[0].mxu0
    %338 = vdwg.mxu0
    %v339 = vld [vmem:[%s4] sm:$0xff]
    %v340 = vld [vmem:[%s4 + $0x8] sm:$0xff]
    %v341 = vld [vmem:[%s4 + $0x10] sm:$0xff]
    %v342 = vld [vmem:[%s4 + $0x18] sm:$0xff]
    %v343 = vld [vmem:[%s4 + $0x20] sm:$0xff]
    %v344 = vld [vmem:[%s4 + $0x28] sm:$0xff]
    %v345 = vld [vmem:[%s4 + $0x30] sm:$0xff]
    %v346 = vld [vmem:[%s4 + $0x38] sm:$0xff]
    %v347 = vld [vmem:[%s4 + $0x40] sm:$0xff]
    %v348 = vld [vmem:[%s4 + $0x48] sm:$0xff]
    %v349 = vld [vmem:[%s5] sm:$0x1]
    %vm350 = vcmask 654336
    %v352 = vsel %vm350, %v336, 0
    %354 = vmatprep.subr.mxu0 0.0
    %355 = vmatpush1.msra.mxu0 %v339
    %356 = vmatprep.subr.mxu0 0.0
    %357 = vmatpush1.msra.mxu0 %v340
    %358 = vmatprep.subr.mxu0 0.0
    %359 = vmatpush1.msra.mxu0 %v341
    %360 = vmatprep.subr.mxu0 0.0
    %361 = vmatpush1.msra.mxu0 %v342
    %362 = vmatprep.subr.mxu0 0.0
    %363 = vmatpush1.msra.mxu0 %v343
    %364 = vmatprep.subr.mxu0 0.0
    %365 = vmatpush1.msra.mxu0 %v344
    %366 = vmatprep.subr.mxu0 0.0
    %367 = vmatpush1.msra.mxu0 %v345
    %368 = vmatprep.subr.mxu0 0.0
    %369 = vmatpush1.msra.mxu0 %v346
    %370 = vmatprep.subr.mxu0 0.0
    %371 = vmatpush1.msra.mxu0 %v347
    %372 = vmatprep.subr.mxu0 0.0
    %373 = vmatpush1.msra.mxu0 %v348
    %374 = vmatprep.subr.mxu0 0.0
    %375 = vmatpush1.msra.mxu0 0.0
    %376 = vmatprep.subr.mxu0 0.0
    %377 = vmatpush1.msra.mxu0 0.0
    %378 = vmatprep.subr.mxu0 0.0
    %379 = vmatpush1.msra.mxu0 0.0
    %380 = vmatprep.subr.mxu0 0.0
    %381 = vmatpush1.msra.mxu0 0.0
    %382 = vmatprep.subr.mxu0 0.0
    %383 = vmatpush1.msra.mxu0 0.0
    %384 = vmatprep.subr.mxu0 0.0
    %385 = vmatpush1.msra.mxu0 0.0
    %386 = vmatprep.subr.mxu0 0.0
    %387 = vmatpush1.msra.mxu0 0.0
    %388 = vmatprep.subr.mxu0 0.0
    %389 = vmatpush1.msra.mxu0 0.0
    %390 = vmatprep.subr.mxu0 0.0
    %391 = vmatpush1.msra.mxu0 0.0
    %392 = vmatprep.subr.mxu0 0.0
    %393 = vmatpush1.msra.mxu0 0.0
    %394 = vmatprep.subr.mxu0 0.0
    %395 = vmatpush1.msra.mxu0 0.0
    %396 = vmatprep.subr.mxu0 0.0
    %397 = vmatpush1.msra.mxu0 0.0
    %398 = vmatprep.subr.mxu0 0.0
    %399 = vmatpush1.msra.mxu0 0.0
    %400 = vmatprep.subr.mxu0 0.0
    %401 = vmatpush1.msra.mxu0 0.0
    %402 = vmatprep.subr.mxu0 0.0
    %403 = vmatpush1.msra.mxu0 0.0
    %404 = vmatprep.subr.mxu0 0.0
    %405 = vmatpush1.msra.mxu0 0.0
    %406 = vmatprep.subr.mxu0 0.0
    %407 = vmatpush1.msra.mxu0 0.0
    %408 = vmatprep.subr.mxu0 0.0
    %409 = vmatpush1.msra.mxu0 0.0
    %410 = vmatprep.subr.mxu0 0.0
    %411 = vmatpush1.msra.mxu0 0.0
    %412 = vmatprep.subr.mxu0 0.0
    %413 = vmatpush1.msra.mxu0 0.0
    %414 = vmatprep.subr.mxu0 0.0
    %415 = vmatpush1.msra.mxu0 0.0
    %416 = vmatprep.subr.mxu0 0.0
    %417 = vmatpush1.msra.mxu0 0.0
    %418 = vmatprep.mubr.f32.mxu0 0.0
    %419 = vmatmul.mubr.f32.gmra.mrb[0].mxu0 %v352
    %v420 = vpop.f32.mrb[0].mxu0
    %v421 = vadd.f32 %v349, %v420
    %v422 = vpop.f32.mrb[0].mxu0
    %423 = vdwg.mxu0
    %v424 = vmax.f32 %v421, 0.0
    %v425 = vld [vmem:[%s6] sm:$0xff]
    %v426 = vld [vmem:[%s7] sm:$0x1]
    %vm427 = vcmask 64512
    %v429 = vsel %vm427, %v424, 0
    %431 = vmatprep.subr.mxu0 0.0
    %432 = vmatpush1.msra.mxu0 %v425
    %433 = vmatprep.subr.mxu0 0.0
    %434 = vmatpush1.msra.mxu0 0.0
    %435 = vmatprep.subr.mxu0 0.0
    %436 = vmatpush1.msra.mxu0 0.0
    %437 = vmatprep.subr.mxu0 0.0
    %438 = vmatpush1.msra.mxu0 0.0
    %439 = vmatprep.subr.mxu0 0.0
    %440 = vmatpush1.msra.mxu0 0.0
    %441 = vmatprep.subr.mxu0 0.0
    %442 = vmatpush1.msra.mxu0 0.0
    %443 = vmatprep.subr.mxu0 0.0
    %444 = vmatpush1.msra.mxu0 0.0
    %445 = vmatprep.subr.mxu0 0.0
    %446 = vmatpush1.msra.mxu0 0.0
    %447 = vmatprep.subr.mxu0 0.0
    %448 = vmatpush1.msra.mxu0 0.0
    %449 = vmatprep.subr.mxu0 0.0
    %450 = vmatpush1.msra.mxu0 0.0
    %451 = vmatprep.subr.mxu0 0.0
    %452 = vmatpush1.msra.mxu0 0.0
    %453 = vmatprep.subr.mxu0 0.0
    %454 = vmatpush1.msra.mxu0 0.0
    %455 = vmatprep.subr.mxu0 0.0
    %456 = vmatpush1.msra.mxu0 0.0
    %457 = vmatprep.subr.mxu0 0.0
    %458 = vmatpush1.msra.mxu0 0.0
    %459 = vmatprep.subr.mxu0 0.0
    %460 = vmatpush1.msra.mxu0 0.0
    %461 = vmatprep.subr.mxu0 0.0
    %462 = vmatpush1.msra.mxu0 0.0
    %463 = vmatprep.subr.mxu0 0.0
    %464 = vmatpush1.msra.mxu0 0.0
    %465 = vmatprep.subr.mxu0 0.0
    %466 = vmatpush1.msra.mxu0 0.0
    %467 = vmatprep.subr.mxu0 0.0
    %468 = vmatpush1.msra.mxu0 0.0
    %469 = vmatprep.subr.mxu0 0.0
    %470 = vmatpush1.msra.mxu0 0.0
    %471 = vmatprep.subr.mxu0 0.0
    %472 = vmatpush1.msra.mxu0 0.0
    %473 = vmatprep.subr.mxu0 0.0
    %474 = vmatpush1.msra.mxu0 0.0
    %475 = vmatprep.subr.mxu0 0.0
    %476 = vmatpush1.msra.mxu0 0.0
    %477 = vmatprep.subr.mxu0 0.0
    %478 = vmatpush1.msra.mxu0 0.0
    %479 = vmatprep.subr.mxu0 0.0
    %480 = vmatpush1.msra.mxu0 0.0
    %481 = vmatprep.subr.mxu0 0.0
    %482 = vmatpush1.msra.mxu0 0.0
    %483 = vmatprep.subr.mxu0 0.0
    %484 = vmatpush1.msra.mxu0 0.0
    %485 = vmatprep.subr.mxu0 0.0
    %486 = vmatpush1.msra.mxu0 0.0
    %487 = vmatprep.subr.mxu0 0.0
    %488 = vmatpush1.msra.mxu0 0.0
    %489 = vmatprep.subr.mxu0 0.0
    %490 = vmatpush1.msra.mxu0 0.0
    %491 = vmatprep.subr.mxu0 0.0
    %492 = vmatpush1.msra.mxu0 0.0
    %493 = vmatprep.subr.mxu0 0.0
    %494 = vmatpush1.msra.mxu0 0.0
    %495 = vmatprep.mubr.f32.mxu0 0.0
    %496 = vmatmul.mubr.f32.gmra.mrb[0].mxu0 %v429
    %v497 = vpop.f32.mrb[0].mxu0
    %v498 = vadd.f32 %v426, %v497
    %v499 = vpop.f32.mrb[0].mxu0
    %500 = vdwg.mxu0
    %v501 = vlaneseq
    %v502 = vshrl.u32 %v501, 7
    %v503 = vsub.s32 0, %v502
    %v504 = vrot.slane %v498, %v503
    %v505 = vld [vmem:[%s8] sm:$0xf]
    %v506 = vmul.f32 %v504, %v505
    %v507 = vld [vmem:[%s9] sm:$0xff]
    %v508 = vld [vmem:[%s9 + $0x8] sm:$0xff]
    %v509 = vld [vmem:[%s9 + $0x10] sm:$0xff]
    %v510 = vld [vmem:[%s9 + $0x18] sm:$0xff]
    %vm511 = vcmask 261120
    %v513 = vsel %vm511, %v506, 0
    %515 = vmatprep.subr.mxu0 0.0
    %516 = vmatpush1.msra.mxu0 %v507
    %517 = vmatprep.subr.mxu0 0.0
    %518 = vmatpush1.msra.mxu0 %v508
    %519 = vmatprep.subr.mxu0 0.0
    %520 = vmatpush1.msra.mxu0 %v509
    %521 = vmatprep.subr.mxu0 0.0
    %522 = vmatpush1.msra.mxu0 %v510
    %523 = vmatprep.subr.mxu0 0.0
    %524 = vmatpush1.msra.mxu0 0.0
    %525 = vmatprep.subr.mxu0 0.0
    %526 = vmatpush1.msra.mxu0 0.0
    %527 = vmatprep.subr.mxu0 0.0
    %528 = vmatpush1.msra.mxu0 0.0
    %529 = vmatprep.subr.mxu0 0.0
    %530 = vmatpush1.msra.mxu0 0.0
    %531 = vmatprep.subr.mxu0 0.0
    %532 = vmatpush1.msra.mxu0 0.0
    %533 = vmatprep.subr.mxu0 0.0
    %534 = vmatpush1.msra.mxu0 0.0
    %535 = vmatprep.subr.mxu0 0.0
    %536 = vmatpush1.msra.mxu0 0.0
    %537 = vmatprep.subr.mxu0 0.0
    %538 = vmatpush1.msra.mxu0 0.0
    %539 = vmatprep.subr.mxu0 0.0
    %540 = vmatpush1.msra.mxu0 0.0
    %541 = vmatprep.subr.mxu0 0.0
    %542 = vmatpush1.msra.mxu0 0.0
    %543 = vmatprep.subr.mxu0 0.0
    %544 = vmatpush1.msra.mxu0 0.0
    %545 = vmatprep.subr.mxu0 0.0
    %546 = vmatpush1.msra.mxu0 0.0
    %547 = vmatprep.subr.mxu0 0.0
    %548 = vmatpush1.msra.mxu0 0.0
    %549 = vmatprep.subr.mxu0 0.0
    %550 = vmatpush1.msra.mxu0 0.0
    %551 = vmatprep.subr.mxu0 0.0
    %552 = vmatpush1.msra.mxu0 0.0
    %553 = vmatprep.subr.mxu0 0.0
    %554 = vmatpush1.msra.mxu0 0.0
    %555 = vmatprep.subr.mxu0 0.0
    %556 = vmatpush1.msra.mxu0 0.0
    %557 = vmatprep.subr.mxu0 0.0
    %558 = vmatpush1.msra.mxu0 0.0
    %559 = vmatprep.subr.mxu0 0.0
    %560 = vmatpush1.msra.mxu0 0.0
    %561 = vmatprep.subr.mxu0 0.0
    %562 = vmatpush1.msra.mxu0 0.0
    %563 = vmatprep.subr.mxu0 0.0
    %564 = vmatpush1.msra.mxu0 0.0
    %565 = vmatprep.subr.mxu0 0.0
    %566 = vmatpush1.msra.mxu0 0.0
    %567 = vmatprep.subr.mxu0 0.0
    %568 = vmatpush1.msra.mxu0 0.0
    %569 = vmatprep.subr.mxu0 0.0
    %570 = vmatpush1.msra.mxu0 0.0
    %571 = vmatprep.subr.mxu0 0.0
    %572 = vmatpush1.msra.mxu0 0.0
    %573 = vmatprep.subr.mxu0 0.0
    %574 = vmatpush1.msra.mxu0 0.0
    %575 = vmatprep.subr.mxu0 0.0
    %576 = vmatpush1.msra.mxu0 0.0
    %577 = vmatprep.subr.mxu0 0.0
    %578 = vmatpush1.msra.mxu0 0.0
    %579 = vmatprep.mubr.f32.mxu0 0.0
    %580 = vmatmul.mubr.f32.gmra.mrb[0].mxu0 %v513
    %v581 = vpop.f32.mrb[0].mxu0
    %v582 = vadd.f32 0.0, %v581
    %v583 = vpop.f32.mrb[0].mxu0
    %584 = vdwg.mxu0
    %vm585 = vcmask 31744
    %v587 = vsel %vm585, %v582, 0
    %vm589 = vcmask 1043456
    %v590 = vsel %vm589, %v582, 0
    %592 = vmatprep.subr.mxu0 0.0
    %593 = vmatpush1.msra.mxu0 %v590
    %594 = vmatprep.subr.mxu0 0.0
    %595 = vmatpush1.msra.mxu0 0.0
    %596 = vmatprep.subr.mxu0 0.0
    %597 = vmatpush1.msra.mxu0 0.0
    %598 = vmatprep.subr.mxu0 0.0
    %599 = vmatpush1.msra.mxu0 0.0
    %600 = vmatprep.subr.mxu0 0.0
    %601 = vmatpush1.msra.mxu0 0.0
    %602 = vmatprep.subr.mxu0 0.0
    %603 = vmatpush1.msra.mxu0 0.0
    %604 = vmatprep.subr.mxu0 0.0
    %605 = vmatpush1.msra.mxu0 0.0
    %606 = vmatprep.subr.mxu0 0.0
    %607 = vmatpush1.msra.mxu0 0.0
    %608 = vmatprep.subr.mxu0 0.0
    %609 = vmatpush1.msra.mxu0 0.0
    %610 = vmatprep.subr.mxu0 0.0
    %611 = vmatpush1.msra.mxu0 0.0
    %612 = vmatprep.subr.mxu0 0.0
    %613 = vmatpush1.msra.mxu0 0.0
    %614 = vmatprep.subr.mxu0 0.0
    %615 = vmatpush1.msra.mxu0 0.0
    %616 = vmatprep.subr.mxu0 0.0
    %617 = vmatpush1.msra.mxu0 0.0
    %618 = vmatprep.subr.mxu0 0.0
    %619 = vmatpush1.msra.mxu0 0.0
    %620 = vmatprep.subr.mxu0 0.0
    %621 = vmatpush1.msra.mxu0 0.0
    %622 = vmatprep.subr.mxu0 0.0
    %623 = vmatpush1.msra.mxu0 0.0
    %624 = vmatprep.subr.mxu0 0.0
    %625 = vmatpush1.msra.mxu0 0.0
    %626 = vmatprep.subr.mxu0 0.0
    %627 = vmatpush1.msra.mxu0 0.0
    %628 = vmatprep.subr.mxu0 0.0
    %629 = vmatpush1.msra.mxu0 0.0
    %630 = vmatprep.subr.mxu0 0.0
    %631 = vmatpush1.msra.mxu0 0.0
    %632 = vmatprep.subr.mxu0 0.0
    %633 = vmatpush1.msra.mxu0 0.0
    %634 = vmatprep.subr.mxu0 0.0
    %635 = vmatpush1.msra.mxu0 0.0
    %636 = vmatprep.subr.mxu0 0.0
    %637 = vmatpush1.msra.mxu0 0.0
    %638 = vmatprep.subr.mxu0 0.0
    %639 = vmatpush1.msra.mxu0 0.0
    %640 = vmatprep.subr.mxu0 0.0
    %641 = vmatpush1.msra.mxu0 0.0
    %642 = vmatprep.subr.mxu0 0.0
    %643 = vmatpush1.msra.mxu0 0.0
    %644 = vmatprep.subr.mxu0 0.0
    %645 = vmatpush1.msra.mxu0 0.0
    %646 = vmatprep.subr.mxu0 0.0
    %647 = vmatpush1.msra.mxu0 0.0
    %648 = vmatprep.subr.mxu0 0.0
    %649 = vmatpush1.msra.mxu0 0.0
    %650 = vmatprep.subr.mxu0 0.0
    %651 = vmatpush1.msra.mxu0 0.0
    %652 = vmatprep.subr.mxu0 0.0
    %653 = vmatpush1.msra.mxu0 0.0
    %654 = vmatprep.subr.mxu0 0.0
    %655 = vmatpush1.msra.mxu0 0.0
    %656 = vmatprep.mubr.f32.mxu0 0.0
    %657 = vmatmul.mubr.f32.gmra.mrb[0].mxu0 %v587
    %v658 = vpop.f32.mrb[0].mxu0
    %v659 = vadd.f32 0.0, %v658
    %v660 = vpop.f32.mrb[0].mxu0
    %661 = vdwg.mxu0
    %662 = vrot.lane.b32.xlu0 %v582, 124
    %v663 = vpop.permute.xlu0 %662
    %v664 = vsel %vm585, %v663, 0
    %v666 = vsel %vm589, %v663, 0
    %668 = vmatprep.subr.mxu0 0.0
    %669 = vmatpush1.msra.mxu0 %v666
    %670 = vmatprep.subr.mxu0 0.0
    %671 = vmatpush1.msra.mxu0 0.0
    %672 = vmatprep.subr.mxu0 0.0
    %673 = vmatpush1.msra.mxu0 0.0
    %674 = vmatprep.subr.mxu0 0.0
    %675 = vmatpush1.msra.mxu0 0.0
    %676 = vmatprep.subr.mxu0 0.0
    %677 = vmatpush1.msra.mxu0 0.0
    %678 = vmatprep.subr.mxu0 0.0
    %679 = vmatpush1.msra.mxu0 0.0
    %680 = vmatprep.subr.mxu0 0.0
    %681 = vmatpush1.msra.mxu0 0.0
    %682 = vmatprep.subr.mxu0 0.0
    %683 = vmatpush1.msra.mxu0 0.0
    %684 = vmatprep.subr.mxu0 0.0
    %685 = vmatpush1.msra.mxu0 0.0
    %686 = vmatprep.subr.mxu0 0.0
    %687 = vmatpush1.msra.mxu0 0.0
    %688 = vmatprep.subr.mxu0 0.0
    %689 = vmatpush1.msra.mxu0 0.0
    %690 = vmatprep.subr.mxu0 0.0
    %691 = vmatpush1.msra.mxu0 0.0
    %692 = vmatprep.subr.mxu0 0.0
    %693 = vmatpush1.msra.mxu0 0.0
    %694 = vmatprep.subr.mxu0 0.0
    %695 = vmatpush1.msra.mxu0 0.0
    %696 = vmatprep.subr.mxu0 0.0
    %697 = vmatpush1.msra.mxu0 0.0
    %698 = vmatprep.subr.mxu0 0.0
    %699 = vmatpush1.msra.mxu0 0.0
    %700 = vmatprep.subr.mxu0 0.0
    %701 = vmatpush1.msra.mxu0 0.0
    %702 = vmatprep.subr.mxu0 0.0
    %703 = vmatpush1.msra.mxu0 0.0
    %704 = vmatprep.subr.mxu0 0.0
    %705 = vmatpush1.msra.mxu0 0.0
    %706 = vmatprep.subr.mxu0 0.0
    %707 = vmatpush1.msra.mxu0 0.0
    %708 = vmatprep.subr.mxu0 0.0
    %709 = vmatpush1.msra.mxu0 0.0
    %710 = vmatprep.subr.mxu0 0.0
    %711 = vmatpush1.msra.mxu0 0.0
    %712 = vmatprep.subr.mxu0 0.0
    %713 = vmatpush1.msra.mxu0 0.0
    %714 = vmatprep.subr.mxu0 0.0
    %715 = vmatpush1.msra.mxu0 0.0
    %716 = vmatprep.subr.mxu0 0.0
    %717 = vmatpush1.msra.mxu0 0.0
    %718 = vmatprep.subr.mxu0 0.0
    %719 = vmatpush1.msra.mxu0 0.0
    %720 = vmatprep.subr.mxu0 0.0
    %721 = vmatpush1.msra.mxu0 0.0
    %722 = vmatprep.subr.mxu0 0.0
    %723 = vmatpush1.msra.mxu0 0.0
    %724 = vmatprep.subr.mxu0 0.0
    %725 = vmatpush1.msra.mxu0 0.0
    %726 = vmatprep.subr.mxu0 0.0
    %727 = vmatpush1.msra.mxu0 0.0
    %728 = vmatprep.subr.mxu0 0.0
    %729 = vmatpush1.msra.mxu0 0.0
    %730 = vmatprep.subr.mxu0 0.0
    %731 = vmatpush1.msra.mxu0 0.0
    %732 = vmatprep.mubr.f32.mxu0 0.0
    %733 = vmatmul.mubr.f32.gmra.mrb[0].mxu0 %v664
    %v734 = vpop.f32.mrb[0].mxu0
    %v735 = vadd.f32 0.0, %v734
    %v736 = vpop.f32.mrb[0].mxu0
    %737 = vdwg.mxu0
    %v738 = vsub.f32 %v659, %v735
    %739 = vmatprep.subr.mxu0 0.0
    %740 = vmatpush1.msra.mxu0 %v590
    %741 = vmatprep.subr.mxu0 0.0
    %742 = vmatpush1.msra.mxu0 0.0
    %743 = vmatprep.subr.mxu0 0.0
    %744 = vmatpush1.msra.mxu0 0.0
    %745 = vmatprep.subr.mxu0 0.0
    %746 = vmatpush1.msra.mxu0 0.0
    %747 = vmatprep.subr.mxu0 0.0
    %748 = vmatpush1.msra.mxu0 0.0
    %749 = vmatprep.subr.mxu0 0.0
    %750 = vmatpush1.msra.mxu0 0.0
    %751 = vmatprep.subr.mxu0 0.0
    %752 = vmatpush1.msra.mxu0 0.0
    %753 = vmatprep.subr.mxu0 0.0
    %754 = vmatpush1.msra.mxu0 0.0
    %755 = vmatprep.subr.mxu0 0.0
    %756 = vmatpush1.msra.mxu0 0.0
    %757 = vmatprep.subr.mxu0 0.0
    %758 = vmatpush1.msra.mxu0 0.0
    %759 = vmatprep.subr.mxu0 0.0
    %760 = vmatpush1.msra.mxu0 0.0
    %761 = vmatprep.subr.mxu0 0.0
    %762 = vmatpush1.msra.mxu0 0.0
    %763 = vmatprep.subr.mxu0 0.0
    %764 = vmatpush1.msra.mxu0 0.0
    %765 = vmatprep.subr.mxu0 0.0
    %766 = vmatpush1.msra.mxu0 0.0
    %767 = vmatprep.subr.mxu0 0.0
    %768 = vmatpush1.msra.mxu0 0.0
    %769 = vmatprep.subr.mxu0 0.0
    %770 = vmatpush1.msra.mxu0 0.0
    %771 = vmatprep.subr.mxu0 0.0
    %772 = vmatpush1.msra.mxu0 0.0
    %773 = vmatprep.subr.mxu0 0.0
    %774 = vmatpush1.msra.mxu0 0.0
    %775 = vmatprep.subr.mxu0 0.0
    %776 = vmatpush1.msra.mxu0 0.0
    %777 = vmatprep.subr.mxu0 0.0
    %778 = vmatpush1.msra.mxu0 0.0
    %779 = vmatprep.subr.mxu0 0.0
    %780 = vmatpush1.msra.mxu0 0.0
    %781 = vmatprep.subr.mxu0 0.0
    %782 = vmatpush1.msra.mxu0 0.0
    %783 = vmatprep.subr.mxu0 0.0
    %784 = vmatpush1.msra.mxu0 0.0
    %785 = vmatprep.subr.mxu0 0.0
    %786 = vmatpush1.msra.mxu0 0.0
    %787 = vmatprep.subr.mxu0 0.0
    %788 = vmatpush1.msra.mxu0 0.0
    %789 = vmatprep.subr.mxu0 0.0
    %790 = vmatpush1.msra.mxu0 0.0
    %791 = vmatprep.subr.mxu0 0.0
    %792 = vmatpush1.msra.mxu0 0.0
    %793 = vmatprep.subr.mxu0 0.0
    %794 = vmatpush1.msra.mxu0 0.0
    %795 = vmatprep.subr.mxu0 0.0
    %796 = vmatpush1.msra.mxu0 0.0
    %797 = vmatprep.subr.mxu0 0.0
    %798 = vmatpush1.msra.mxu0 0.0
    %799 = vmatprep.subr.mxu0 0.0
    %800 = vmatpush1.msra.mxu0 0.0
    %801 = vmatprep.subr.mxu0 0.0
    %802 = vmatpush1.msra.mxu0 0.0
    %803 = vmatprep.mubr.f32.mxu0 0.0
    %804 = vmatmul.mubr.f32.gmra.mrb[0].mxu0 %v664
    %v805 = vpop.f32.mrb[0].mxu0
    %v806 = vadd.f32 0.0, %v805
    %v807 = vpop.f32.mrb[0].mxu0
    %808 = vdwg.mxu0
    %809 = vmatprep.subr.mxu0 0.0
    %810 = vmatpush1.msra.mxu0 %v666
    %811 = vmatprep.subr.mxu0 0.0
    %812 = vmatpush1.msra.mxu0 0.0
    %813 = vmatprep.subr.mxu0 0.0
    %814 = vmatpush1.msra.mxu0 0.0
    %815 = vmatprep.subr.mxu0 0.0
    %816 = vmatpush1.msra.mxu0 0.0
    %817 = vmatprep.subr.mxu0 0.0
    %818 = vmatpush1.msra.mxu0 0.0
    %819 = vmatprep.subr.mxu0 0.0
    %820 = vmatpush1.msra.mxu0 0.0
    %821 = vmatprep.subr.mxu0 0.0
    %822 = vmatpush1.msra.mxu0 0.0
    %823 = vmatprep.subr.mxu0 0.0
    %824 = vmatpush1.msra.mxu0 0.0
    %825 = vmatprep.subr.mxu0 0.0
    %826 = vmatpush1.msra.mxu0 0.0
    %827 = vmatprep.subr.mxu0 0.0
    %828 = vmatpush1.msra.mxu0 0.0
    %829 = vmatprep.subr.mxu0 0.0
    %830 = vmatpush1.msra.mxu0 0.0
    %831 = vmatprep.subr.mxu0 0.0
    %832 = vmatpush1.msra.mxu0 0.0
    %833 = vmatprep.subr.mxu0 0.0
    %834 = vmatpush1.msra.mxu0 0.0
    %835 = vmatprep.subr.mxu0 0.0
    %836 = vmatpush1.msra.mxu0 0.0
    %837 = vmatprep.subr.mxu0 0.0
    %838 = vmatpush1.msra.mxu0 0.0
    %839 = vmatprep.subr.mxu0 0.0
    %840 = vmatpush1.msra.mxu0 0.0
    %841 = vmatprep.subr.mxu0 0.0
    %842 = vmatpush1.msra.mxu0 0.0
    %843 = vmatprep.subr.mxu0 0.0
    %844 = vmatpush1.msra.mxu0 0.0
    %845 = vmatprep.subr.mxu0 0.0
    %846 = vmatpush1.msra.mxu0 0.0
    %847 = vmatprep.subr.mxu0 0.0
    %848 = vmatpush1.msra.mxu0 0.0
    %849 = vmatprep.subr.mxu0 0.0
    %850 = vmatpush1.msra.mxu0 0.0
    %851 = vmatprep.subr.mxu0 0.0
    %852 = vmatpush1.msra.mxu0 0.0
    %853 = vmatprep.subr.mxu0 0.0
    %854 = vmatpush1.msra.mxu0 0.0
    %855 = vmatprep.subr.mxu0 0.0
    %856 = vmatpush1.msra.mxu0 0.0
    %857 = vmatprep.subr.mxu0 0.0
    %858 = vmatpush1.msra.mxu0 0.0
    %859 = vmatprep.subr.mxu0 0.0
    %860 = vmatpush1.msra.mxu0 0.0
    %861 = vmatprep.subr.mxu0 0.0
    %862 = vmatpush1.msra.mxu0 0.0
    %863 = vmatprep.subr.mxu0 0.0
    %864 = vmatpush1.msra.mxu0 0.0
    %865 = vmatprep.subr.mxu0 0.0
    %866 = vmatpush1.msra.mxu0 0.0
    %867 = vmatprep.subr.mxu0 0.0
    %868 = vmatpush1.msra.mxu0 0.0
    %869 = vmatprep.subr.mxu0 0.0
    %870 = vmatpush1.msra.mxu0 0.0
    %871 = vmatprep.subr.mxu0 0.0
    %872 = vmatpush1.msra.mxu0 0.0
    %873 = vmatprep.mubr.f32.mxu0 0.0
    %874 = vmatmul.mubr.f32.gmra.mrb[0].mxu0 %v587
    %v875 = vpop.f32.mrb[0].mxu0
    %v876 = vadd.f32 %v806, %v875
    %v877 = vpop.f32.mrb[0].mxu0
    %878 = vdwg.mxu0
    %v879 = vld [vmem:[%s10] sm:$0xf]
    %v880 = vmul.f32 %v738, %v879
    %vm881 = vcmask 27648
    %v882 = vsel %vm881, %v880, 0.0
    %883 = vadd.xlane.f32.xlu0 %v882
    %v884 = vpop.xlane.xlu0 %883
    %v885 = vrot.slane %v884, 4
    %v886 = vadd.f32 %v884, %v885
    %v887 = vrot.slane %v886, 2
    %v888 = vadd.f32 %v886, %v887
    %v889 = vrot.slane %v888, 1
    %v890 = vadd.f32 %v888, %v889
    %s891 = vtos %v890
    %v892 = vld [vmem:[%s11] sm:$0xff]
    %v894 = vrot.slane %v892, 4
    %v896 = vsel %vm585, %v876, 0
    %v898 = vsel %vm589, %v894, 0
    %900 = vmatprep.subr.mxu0 0.0
    %901 = vmatpush1.msra.mxu0 %v898
    %902 = vmatprep.subr.mxu0 0.0
    %903 = vmatpush1.msra.mxu0 0.0
    %904 = vmatprep.subr.mxu0 0.0
    %905 = vmatpush1.msra.mxu0 0.0
    %906 = vmatprep.subr.mxu0 0.0
    %907 = vmatpush1.msra.mxu0 0.0
    %908 = vmatprep.subr.mxu0 0.0
    %909 = vmatpush1.msra.mxu0 0.0
    %910 = vmatprep.subr.mxu0 0.0
    %911 = vmatpush1.msra.mxu0 0.0
    %912 = vmatprep.subr.mxu0 0.0
    %913 = vmatpush1.msra.mxu0 0.0
    %914 = vmatprep.subr.mxu0 0.0
    %915 = vmatpush1.msra.mxu0 0.0
    %916 = vmatprep.subr.mxu0 0.0
    %917 = vmatpush1.msra.mxu0 0.0
    %918 = vmatprep.subr.mxu0 0.0
    %919 = vmatpush1.msra.mxu0 0.0
    %920 = vmatprep.subr.mxu0 0.0
    %921 = vmatpush1.msra.mxu0 0.0
    %922 = vmatprep.subr.mxu0 0.0
    %923 = vmatpush1.msra.mxu0 0.0
    %924 = vmatprep.subr.mxu0 0.0
    %925 = vmatpush1.msra.mxu0 0.0
    %926 = vmatprep.subr.mxu0 0.0
    %927 = vmatpush1.msra.mxu0 0.0
    %928 = vmatprep.subr.mxu0 0.0
    %929 = vmatpush1.msra.mxu0 0.0
    %930 = vmatprep.subr.mxu0 0.0
    %931 = vmatpush1.msra.mxu0 0.0
    %932 = vmatprep.subr.mxu0 0.0
    %933 = vmatpush1.msra.mxu0 0.0
    %934 = vmatprep.subr.mxu0 0.0
    %935 = vmatpush1.msra.mxu0 0.0
    %936 = vmatprep.subr.mxu0 0.0
    %937 = vmatpush1.msra.mxu0 0.0
    %938 = vmatprep.subr.mxu0 0.0
    %939 = vmatpush1.msra.mxu0 0.0
    %940 = vmatprep.subr.mxu0 0.0
    %941 = vmatpush1.msra.mxu0 0.0
    %942 = vmatprep.subr.mxu0 0.0
    %943 = vmatpush1.msra.mxu0 0.0
    %944 = vmatprep.subr.mxu0 0.0
    %945 = vmatpush1.msra.mxu0 0.0
    %946 = vmatprep.subr.mxu0 0.0
    %947 = vmatpush1.msra.mxu0 0.0
    %948 = vmatprep.subr.mxu0 0.0
    %949 = vmatpush1.msra.mxu0 0.0
    %950 = vmatprep.subr.mxu0 0.0
    %951 = vmatpush1.msra.mxu0 0.0
    %952 = vmatprep.subr.mxu0 0.0
    %953 = vmatpush1.msra.mxu0 0.0
    %954 = vmatprep.subr.mxu0 0.0
    %955 = vmatpush1.msra.mxu0 0.0
    %956 = vmatprep.subr.mxu0 0.0
    %957 = vmatpush1.msra.mxu0 0.0
    %958 = vmatprep.subr.mxu0 0.0
    %959 = vmatpush1.msra.mxu0 0.0
    %960 = vmatprep.subr.mxu0 0.0
    %961 = vmatpush1.msra.mxu0 0.0
    %962 = vmatprep.subr.mxu0 0.0
    %963 = vmatpush1.msra.mxu0 0.0
    %964 = vmatprep.mubr.f32.mxu0 0.0
    %965 = vmatmul.mubr.f32.gmra.mrb[0].mxu0 %v896
    %v966 = vpop.f32.mrb[0].mxu0
    %v967 = vadd.f32 0.0, %v966
    %v968 = vpop.f32.mrb[0].mxu0
    %969 = vdwg.mxu0
    %v971 = vsel %vm585, %v738, 0
    %v973 = vsel %vm589, %v892, 0
    %975 = vmatprep.subr.mxu0 0.0
    %976 = vmatpush1.msra.mxu0 %v973
    %977 = vmatprep.subr.mxu0 0.0
    %978 = vmatpush1.msra.mxu0 0.0
    %979 = vmatprep.subr.mxu0 0.0
    %980 = vmatpush1.msra.mxu0 0.0
    %981 = vmatprep.subr.mxu0 0.0
    %982 = vmatpush1.msra.mxu0 0.0
    %983 = vmatprep.subr.mxu0 0.0
    %984 = vmatpush1.msra.mxu0 0.0
    %985 = vmatprep.subr.mxu0 0.0
    %986 = vmatpush1.msra.mxu0 0.0
    %987 = vmatprep.subr.mxu0 0.0
    %988 = vmatpush1.msra.mxu0 0.0
    %989 = vmatprep.subr.mxu0 0.0
    %990 = vmatpush1.msra.mxu0 0.0
    %991 = vmatprep.subr.mxu0 0.0
    %992 = vmatpush1.msra.mxu0 0.0
    %993 = vmatprep.subr.mxu0 0.0
    %994 = vmatpush1.msra.mxu0 0.0
    %995 = vmatprep.subr.mxu0 0.0
    %996 = vmatpush1.msra.mxu0 0.0
    %997 = vmatprep.subr.mxu0 0.0
    %998 = vmatpush1.msra.mxu0 0.0
    %999 = vmatprep.subr.mxu0 0.0
    %1000 = vmatpush1.msra.mxu0 0.0
    %1001 = vmatprep.subr.mxu0 0.0
    %1002 = vmatpush1.msra.mxu0 0.0
    %1003 = vmatprep.subr.mxu0 0.0
    %1004 = vmatpush1.msra.mxu0 0.0
    %1005 = vmatprep.subr.mxu0 0.0
    %1006 = vmatpush1.msra.mxu0 0.0
    %1007 = vmatprep.subr.mxu0 0.0
    %1008 = vmatpush1.msra.mxu0 0.0
    %1009 = vmatprep.subr.mxu0 0.0
    %1010 = vmatpush1.msra.mxu0 0.0
    %1011 = vmatprep.subr.mxu0 0.0
    %1012 = vmatpush1.msra.mxu0 0.0
    %1013 = vmatprep.subr.mxu0 0.0
    %1014 = vmatpush1.msra.mxu0 0.0
    %1015 = vmatprep.subr.mxu0 0.0
    %1016 = vmatpush1.msra.mxu0 0.0
    %1017 = vmatprep.subr.mxu0 0.0
    %1018 = vmatpush1.msra.mxu0 0.0
    %1019 = vmatprep.subr.mxu0 0.0
    %1020 = vmatpush1.msra.mxu0 0.0
    %1021 = vmatprep.subr.mxu0 0.0
    %1022 = vmatpush1.msra.mxu0 0.0
    %1023 = vmatprep.subr.mxu0 0.0
    %1024 = vmatpush1.msra.mxu0 0.0
    %1025 = vmatprep.subr.mxu0 0.0
    %1026 = vmatpush1.msra.mxu0 0.0
    %1027 = vmatprep.subr.mxu0 0.0
    %1028 = vmatpush1.msra.mxu0 0.0
    %1029 = vmatprep.subr.mxu0 0.0
    %1030 = vmatpush1.msra.mxu0 0.0
    %1031 = vmatprep.subr.mxu0 0.0
    %1032 = vmatpush1.msra.mxu0 0.0
    %1033 = vmatprep.subr.mxu0 0.0
    %1034 = vmatpush1.msra.mxu0 0.0
    %1035 = vmatprep.subr.mxu0 0.0
    %1036 = vmatpush1.msra.mxu0 0.0
    %1037 = vmatprep.subr.mxu0 0.0
    %1038 = vmatpush1.msra.mxu0 0.0
    %1039 = vmatprep.mubr.f32.mxu0 0.0
    %1040 = vmatmul.mubr.f32.gmra.mrb[0].mxu0 %v971
    %v1041 = vpop.f32.mrb[0].mxu0
    %v1042 = vadd.f32 %v967, %v1041
    %v1043 = vpop.f32.mrb[0].mxu0
    %1044 = vdwg.mxu0
    %v1045 = vld [vmem:[%s12] sm:$0xf]
    %v1046 = vmul.f32 %v1042, %v1045
    %v1047 = vsel %vm585, 1.0, 0
    %v1050 = vsel %vm589, %v1046, 0
    %1052 = vmatprep.subr.mxu0 0.0
    %1053 = vmatpush1.msra.mxu0 %v1050
    %1054 = vmatprep.subr.mxu0 0.0
    %1055 = vmatpush1.msra.mxu0 0.0
    %1056 = vmatprep.subr.mxu0 0.0
    %1057 = vmatpush1.msra.mxu0 0.0
    %1058 = vmatprep.subr.mxu0 0.0
    %1059 = vmatpush1.msra.mxu0 0.0
    %1060 = vmatprep.subr.mxu0 0.0
    %1061 = vmatpush1.msra.mxu0 0.0
    %1062 = vmatprep.subr.mxu0 0.0
    %1063 = vmatpush1.msra.mxu0 0.0
    %1064 = vmatprep.subr.mxu0 0.0
    %1065 = vmatpush1.msra.mxu0 0.0
    %1066 = vmatprep.subr.mxu0 0.0
    %1067 = vmatpush1.msra.mxu0 0.0
    %1068 = vmatprep.subr.mxu0 0.0
    %1069 = vmatpush1.msra.mxu0 0.0
    %1070 = vmatprep.subr.mxu0 0.0
    %1071 = vmatpush1.msra.mxu0 0.0
    %1072 = vmatprep.subr.mxu0 0.0
    %1073 = vmatpush1.msra.mxu0 0.0
    %1074 = vmatprep.subr.mxu0 0.0
    %1075 = vmatpush1.msra.mxu0 0.0
    %1076 = vmatprep.subr.mxu0 0.0
    %1077 = vmatpush1.msra.mxu0 0.0
    %1078 = vmatprep.subr.mxu0 0.0
    %1079 = vmatpush1.msra.mxu0 0.0
    %1080 = vmatprep.subr.mxu0 0.0
    %1081 = vmatpush1.msra.mxu0 0.0
    %1082 = vmatprep.subr.mxu0 0.0
    %1083 = vmatpush1.msra.mxu0 0.0
    %1084 = vmatprep.subr.mxu0 0.0
    %1085 = vmatpush1.msra.mxu0 0.0
    %1086 = vmatprep.subr.mxu0 0.0
    %1087 = vmatpush1.msra.mxu0 0.0
    %1088 = vmatprep.subr.mxu0 0.0
    %1089 = vmatpush1.msra.mxu0 0.0
    %1090 = vmatprep.subr.mxu0 0.0
    %1091 = vmatpush1.msra.mxu0 0.0
    %1092 = vmatprep.subr.mxu0 0.0
    %1093 = vmatpush1.msra.mxu0 0.0
    %1094 = vmatprep.subr.mxu0 0.0
    %1095 = vmatpush1.msra.mxu0 0.0
    %1096 = vmatprep.subr.mxu0 0.0
    %1097 = vmatpush1.msra.mxu0 0.0
    %1098 = vmatprep.subr.mxu0 0.0
    %1099 = vmatpush1.msra.mxu0 0.0
    %1100 = vmatprep.subr.mxu0 0.0
    %1101 = vmatpush1.msra.mxu0 0.0
    %1102 = vmatprep.subr.mxu0 0.0
    %1103 = vmatpush1.msra.mxu0 0.0
    %1104 = vmatprep.subr.mxu0 0.0
    %1105 = vmatpush1.msra.mxu0 0.0
    %1106 = vmatprep.subr.mxu0 0.0
    %1107 = vmatpush1.msra.mxu0 0.0
    %1108 = vmatprep.subr.mxu0 0.0
    %1109 = vmatpush1.msra.mxu0 0.0
    %1110 = vmatprep.subr.mxu0 0.0
    %1111 = vmatpush1.msra.mxu0 0.0
    %1112 = vmatprep.subr.mxu0 0.0
    %1113 = vmatpush1.msra.mxu0 0.0
    %1114 = vmatprep.subr.mxu0 0.0
    %1115 = vmatpush1.msra.mxu0 0.0
    %1116 = vmatprep.mubr.f32.mxu0 0.0
    %1117 = vmatmul.mubr.f32.gmra.mrb[0].mxu0 %v1047
    %v1118 = vpop.f32.mrb[0].mxu0
    %v1119 = vadd.f32 0.0, %v1118
    %v1120 = vpop.f32.mrb[0].mxu0
    %1121 = vdwg.mxu0
    %v1122 = vld [vmem:[%s13] sm:$0xff]
    %v1123 = vld [vmem:[%s13 + $0x8] sm:$0xff]
    %v1124 = vld [vmem:[%s13 + $0x10] sm:$0xff]
    %v1125 = vld [vmem:[%s13 + $0x18] sm:$0xff]
    %v1126 = vld [vmem:[%s13 + $0x20] sm:$0xff]
    %v1127 = vld [vmem:[%s13 + $0x28] sm:$0xff]
    %v1128 = vld [vmem:[%s13 + $0x30] sm:$0xff]
    %v1129 = vld [vmem:[%s13 + $0x38] sm:$0xff]
    %v1131 = vsel %vm177, %v1119, 0
    %1133 = vmatprep.subr.mxu0 0.0
    %1134 = vmatpush1.msra.mxu0 %v1122
    %1135 = vmatprep.subr.mxu0 0.0
    %1136 = vmatpush1.msra.mxu0 %v1123
    %1137 = vmatprep.subr.mxu0 0.0
    %1138 = vmatpush1.msra.mxu0 %v1124
    %1139 = vmatprep.subr.mxu0 0.0
    %1140 = vmatpush1.msra.mxu0 %v1125
    %1141 = vmatprep.subr.mxu0 0.0
    %1142 = vmatpush1.msra.mxu0 %v1126
    %1143 = vmatprep.subr.mxu0 0.0
    %1144 = vmatpush1.msra.mxu0 %v1127
    %1145 = vmatprep.subr.mxu0 0.0
    %1146 = vmatpush1.msra.mxu0 %v1128
    %1147 = vmatprep.subr.mxu0 0.0
    %1148 = vmatpush1.msra.mxu0 %v1129
    %1149 = vmatprep.subr.mxu0 0.0
    %1150 = vmatpush1.msra.mxu0 0.0
    %1151 = vmatprep.subr.mxu0 0.0
    %1152 = vmatpush1.msra.mxu0 0.0
    %1153 = vmatprep.subr.mxu0 0.0
    %1154 = vmatpush1.msra.mxu0 0.0
    %1155 = vmatprep.subr.mxu0 0.0
    %1156 = vmatpush1.msra.mxu0 0.0
    %1157 = vmatprep.subr.mxu0 0.0
    %1158 = vmatpush1.msra.mxu0 0.0
    %1159 = vmatprep.subr.mxu0 0.0
    %1160 = vmatpush1.msra.mxu0 0.0
    %1161 = vmatprep.subr.mxu0 0.0
    %1162 = vmatpush1.msra.mxu0 0.0
    %1163 = vmatprep.subr.mxu0 0.0
    %1164 = vmatpush1.msra.mxu0 0.0
    %1165 = vmatprep.subr.mxu0 0.0
    %1166 = vmatpush1.msra.mxu0 0.0
    %1167 = vmatprep.subr.mxu0 0.0
    %1168 = vmatpush1.msra.mxu0 0.0
    %1169 = vmatprep.subr.mxu0 0.0
    %1170 = vmatpush1.msra.mxu0 0.0
    %1171 = vmatprep.subr.mxu0 0.0
    %1172 = vmatpush1.msra.mxu0 0.0
    %1173 = vmatprep.subr.mxu0 0.0
    %1174 = vmatpush1.msra.mxu0 0.0
    %1175 = vmatprep.subr.mxu0 0.0
    %1176 = vmatpush1.msra.mxu0 0.0
    %1177 = vmatprep.subr.mxu0 0.0
    %1178 = vmatpush1.msra.mxu0 0.0
    %1179 = vmatprep.subr.mxu0 0.0
    %1180 = vmatpush1.msra.mxu0 0.0
    %1181 = vmatprep.subr.mxu0 0.0
    %1182 = vmatpush1.msra.mxu0 0.0
    %1183 = vmatprep.subr.mxu0 0.0
    %1184 = vmatpush1.msra.mxu0 0.0
    %1185 = vmatprep.subr.mxu0 0.0
    %1186 = vmatpush1.msra.mxu0 0.0
    %1187 = vmatprep.subr.mxu0 0.0
    %1188 = vmatpush1.msra.mxu0 0.0
    %1189 = vmatprep.subr.mxu0 0.0
    %1190 = vmatpush1.msra.mxu0 0.0
    %1191 = vmatprep.subr.mxu0 0.0
    %1192 = vmatpush1.msra.mxu0 0.0
    %1193 = vmatprep.subr.mxu0 0.0
    %1194 = vmatpush1.msra.mxu0 0.0
    %1195 = vmatprep.subr.mxu0 0.0
    %1196 = vmatpush1.msra.mxu0 0.0
    %1197 = vmatprep.mubr.f32.mxu0 0.0
    %1198 = vmatmul.mubr.f32.gmra.mrb[0].mxu0 %v1131
    %v1199 = vpop.f32.mrb[0].mxu0
    %v1200 = vadd.f32 0.0, %v1199
    %v1201 = vpop.f32.mrb[0].mxu0
    %1202 = vdwg.mxu0
    %v1203 = vstv %s891
    %v1204 = vrcp.pop %v1203
    %s1205 = vtos %v1204
    %v1206 = vstv %s1205
    %v1207 = vmul.f32 %v1200, %v1206
    %vm1208 = vcmask 57344
    %1209 = vst.msk [vmem:[#allocation2] sm:$0x1] %vm1208, %v1207
    // Predicated region
    $region58: #{net_conv_forward.1} parent=1 // pred_check
      _
    $region59: #{net_conv_forward.1} parent=1 // pred_check_branch
      %1211 = sbr.rel (0) target = $region61
    $region60: #{net_conv_forward.1} parent=1 // pred_region
      %s1213 = ssub.s32 16, 16
      %1214 = vsyncadd [#allocation3], %s1213
      %s1216 = sshll.u32 [#allocation2], 4
      %s1217 = int_to_ptr.vmem [resolvable:$true] %s1216
      %1219 = dma.vmem_to_hbm [thread:$0]  %s1217, 16, %s14, [#allocation3]
    $region61: #{net_conv_forward.1} parent=1 // pred_fallthru
      _
    // Predicated region
    $region62: #{net_conv_forward.1} parent=1 // pred_check
      _
    $region63: #{net_conv_forward.1} parent=1 // pred_check_branch
      %1221 = sbr.rel (0) target = $region65
    $region64: #{net_conv_forward.1} parent=1 // pred_region
      %1222 = dma.done [#allocation3], 16
    $region65: #{net_conv_forward.1} parent=1 // pred_fallthru
      _
    %1223 = vsyncpa [#allocation3], 1

</llo_original>
